<compile_context>
chip_gen: v7x
topology: tpu7x:2x2x1
jax: 0.10.0
libtpu: 0.0.40
codegen_flags: <defaults>
</compile_context>

<pallas_src>
import numpy as np
import jax
import jax.numpy as jnp
from jax import lax
from jax.experimental import pallas as pl
from jax.experimental.pallas import tpu as pltpu

LN_EPS = 1e-5
GN_EPS = 1e-5
NUM_GROUPS = 16
K_SMALL = 3            # psi / convw kernel size (kernel_size=3)
K_LARGE = 7            # convkw kernel size: up_size = round((3+1)*1.5)=6 -> 6+1 = 7
PAD = K_LARGE // 2

# column layout of the packed per-channel parameter block (C, N_CHAN_PARAMS)
_LN_W, _LN_B, _FC_W, _FC_B, _GFC_W, _GFC_B, _GN_W, _GN_B, _PSI_B, _CKW_B = range(10)
_PSI_W0 = 10                        # 3 psi taps
_CKW_W0 = _PSI_W0 + K_SMALL         # 7 combined convw+convkw taps
N_CHAN_PARAMS = _CKW_W0 + K_LARGE   # = 20


def _make_sgp_kernel(T, use_bf16_act):
    def kernel(x_ref, mask_ref, cpar_ref, gmat_ref, w1_ref, b1_ref, w2_ref,
               b2_ref, out_ref):
        C, W = x_ref.shape
        Bb = W // T

        xw = x_ref[...].astype(jnp.float32)       # (C, W)
        mw = mask_ref[...].astype(jnp.float32)    # (1, W)
        cp = cpar_ref[...]                        # (C, 20) packed per-channel params

        def col(j):                               # (C, 1) per-channel parameter column
            return cp[:, j:j + 1]

        # ---- LayerNorm over the channel (sublane) axis ----
        mu = jnp.mean(xw, axis=0, keepdims=True)
        res = xw - mu
        sigma = jnp.mean(res * res, axis=0, keepdims=True)
        ln = res * lax.rsqrt(sigma + LN_EPS) * col(_LN_W) + col(_LN_B)

        # per-lane position inside its own length-T segment + segment one-hots
        pos1 = lax.broadcasted_iota(jnp.int32, (1, T), 1)
        if Bb == 1:
            pos = pos1                                             # (1, W)
            segT = jnp.ones((1, W), jnp.float32)                   # (Bb, W)
        else:
            pos = jnp.concatenate([pos1] * Bb, axis=1)
            segid = jnp.concatenate(
                [jnp.full((1, T), b, jnp.int32) for b in range(Bb)], axis=1)
            segT = (segid == lax.broadcasted_iota(jnp.int32, (Bb, 1), 0)
                    ).astype(jnp.float32)

        # ---- depthwise convs: psi (k=3) and combined convw+convkw (k=7) ----
        # Each tap offset d uses one XLU roll of ln; a (1, W) 0/1 boundary mask
        # provides both the zero padding at sequence edges and the isolation
        # between adjacent batch segments.  The shifted operand is consumed
        # immediately so only one (C, W) temporary is live per tap.
        psi = ln * col(_PSI_W0 + K_SMALL // 2) + col(_PSI_B)
        ckw = ln * col(_CKW_W0 + K_LARGE // 2) + col(_CKW_B)
        for d in range(-PAD, PAD + 1):
            if d == 0:
                continue
            keep = (pos < T - d) if d > 0 else (pos >= -d)
            sh = pltpu.roll(ln, (-d) % W, 1) * keep.astype(jnp.float32)
            if abs(d) <= K_SMALL // 2:
                psi = psi + col(_PSI_W0 + d + K_SMALL // 2) * sh
            ckw = ckw + col(_CKW_W0 + d + K_LARGE // 2) * sh

        fc = ln * col(_FC_W) + col(_FC_B)         # 1x1 depthwise conv

        # ---- phi = relu(global_fc(mean_T(ln))), all segments at once (MXU) ----
        gmean = jnp.einsum("cw,bw->cb", ln, segT,
                           preferred_element_type=jnp.float32) * (1.0 / T)
        phi = jnp.maximum(gmean * col(_GFC_W) + col(_GFC_B), 0.0)  # (C, Bb)
        phi_w = jnp.einsum("cb,bw->cw", phi, segT,
                           preferred_element_type=jnp.float32)

        out1 = fc * phi_w + ckw * psi + ln
        # drop_path_out / drop_path_mlp are Identity (path_pdrop = 0.0 default)
        out2 = xw * mw + out1                                      # (C, W)

        # ---- GroupNorm(16): batched segment sums + one group-combine matmul ----
        s1 = jnp.einsum("cw,bw->cb", out2, segT,
                        preferred_element_type=jnp.float32)        # (C, Bb)
        s2 = jnp.einsum("cw,bw->cb", out2 * out2, segT,
                        preferred_element_type=jnp.float32)        # (C, Bb)
        # gmat is pre-scaled by 1/((C//16)*T) in the wrapper
        G = jnp.dot(gmat_ref[...], jnp.concatenate([s1, s2], axis=1),
                    preferred_element_type=jnp.float32)            # (C, 2*Bb)
        gm = G[:, :Bb]
        gv = G[:, Bb:] - gm * gm
        rstd = lax.rsqrt(gv + GN_EPS)                              # (C, Bb)
        gm_w = jnp.einsum("cb,bw->cw", gm, segT,
                          preferred_element_type=jnp.float32)
        rstd_w = jnp.einsum("cb,bw->cw", rstd, segT,
                            preferred_element_type=jnp.float32)
        gn = (out2 - gm_w) * rstd_w * col(_GN_W) + col(_GN_B)      # (C, W)

        # ---- MLP: two 1x1 convs as wide-N MXU matmuls (bf16 operands, f32 acc) ----
        h = jnp.dot(w1_ref[...], gn.astype(jnp.bfloat16),
                    preferred_element_type=jnp.float32) + b1_ref[...]  # (H, W)
        if use_bf16_act:                      # packed bf16 VPU/EUP on v6e/v7x
            h = h.astype(jnp.bfloat16)
        h = 0.5 * h * (1.0 + jnp.tanh(0.7978845608028654 *
                                      (h + 0.044715 * h * h * h)))  # tanh GELU
        mlp = jnp.dot(w2_ref[...], h.astype(jnp.bfloat16),
                      preferred_element_type=jnp.float32) + b2_ref[...]  # (C, W)

        out_ref[...] = (out2 + mlp).astype(out_ref.dtype)          # one wide store

    return kernel


def _tpu_generation():
    try:
        kind = jax.devices()[0].device_kind.lower()
    except Exception:
        return None
    for tag, gen in (("v7", 7), ("tpu7", 7), ("v6", 6), ("v5", 5),
                     ("v4", 4), ("v3", 3), ("v2", 2)):
        if tag in kind:
            return gen
    return None


def _pick_batch_block(B, C, T, H, io_itemsize, budget_bytes, force_multi_step):
    """Largest divisor of B whose true per-grid-step working set fits the budget."""
    def working_set(bblk):
        W = bblk * T
        io = 2 * (2 * C * W + W) * io_itemsize          # double-buffered x/out/mask blocks
        temps = (10 * C + H) * W * 4                    # ~10 live (C,W) f32 temps + (H,W) hidden
        return io + temps

    cands = [d for d in range(1, B + 1)
             if B % d == 0 and (d == B or (d * T) % 128 == 0)]
    if force_multi_step and B > 1:                      # keep >= 2 grid steps (v7x: 2 TCs)
        cands = [d for d in cands if d < B] or cands
    fit = [d for d in cands if working_set(d) <= budget_bytes]
    return max(fit) if fit else min(cands)


def sgp_block_forward(x, mask, p):
    # TODO(synk): only the default n_ds_stride=1 path (downsample == Identity,
    # nearest-interp of the mask is a no-op) and eval-mode/pdrop=0 drop-path
    # are implemented.
    B, C, T = x.shape
    H = p["w1"].shape[0]
    assert C % NUM_GROUPS == 0 and C % 8 == 0 and T >= K_LARGE
    assert T % 128 == 0, "lane-dense layout requires T to be a multiple of 128"
    mask_f = mask.astype(x.dtype)

    gen = _tpu_generation()
    if gen == 7:        # 64 MiB physical VMEM, 2 TensorCores/chip, bf16 VPU/EUP
        vmem_limit, budget, use_bf16_act, force_multi = 32 << 20, 24 << 20, True, True
    elif gen == 6:      # 128 MiB VMEM, bf16 VPU/EUP
        vmem_limit, budget, use_bf16_act, force_multi = 96 << 20, 64 << 20, True, False
    elif gen == 5:      # 128 MiB VMEM, no bf16 VPU/EUP
        vmem_limit, budget, use_bf16_act, force_multi = 64 << 20, 48 << 20, False, False
    else:               # unknown: conservative
        vmem_limit, budget, use_bf16_act, force_multi = 32 << 20, 24 << 20, False, False

    bblk = _pick_batch_block(B, C, T, H, x.dtype.itemsize, budget, force_multi)
    W = bblk * T
    grid = (B // bblk,)

    # lane-dense (C, B*T) slab (batch-major along lanes): wide unmasked stores,
    # no in-kernel concatenation.  The transposes are cheap XLA-side plumbing
    # hidden behind the compute-heavy kernel.
    x_slab = jnp.transpose(x, (1, 0, 2)).reshape(C, B * T)
    m_slab = jnp.transpose(mask_f, (1, 0, 2)).reshape(1, B * T)

    # Pack every per-channel vector into one (C, 20) block.  The convw (k=3)
    # taps are folded into the convkw (k=7) taps since the two convolutions are
    # only ever used through (convw + convkw).
    base = jnp.stack(
        [p["ln_w"], p["ln_b"], p["fc_w"], p["fc_b"], p["gfc_w"], p["gfc_b"],
         p["gn_w"], p["gn_b"], p["psi_b"], p["convw_b"] + p["convkw_b"]],
        axis=1)
    lo = K_LARGE // 2 - K_SMALL // 2
    ckw_w = p["convkw_w"].at[:, lo:lo + K_SMALL].add(p["convw_w"])
    cpar = jnp.concatenate([base, p["psi_w"], ckw_w], axis=1).astype(jnp.float32)

    # group-membership matrix with the GroupNorm denominator folded in
    gidx = jnp.arange(C) // (C // NUM_GROUPS)
    gmat = (gidx[:, None] == gidx[None, :]).astype(jnp.float32)
    gmat = gmat * (1.0 / float((C // NUM_GROUPS) * T))             # (C, C)

    w1 = p["w1"].astype(jnp.bfloat16)
    w2 = p["w2"].astype(jnp.bfloat16)
    b1 = p["b1"].astype(jnp.float32)[:, None]
    b2 = p["b2"].astype(jnp.float32)[:, None]

    kernel = _make_sgp_kernel(T, use_bf16_act)
    grid_spec = pltpu.PrefetchScalarGridSpec(
        num_scalar_prefetch=0,
        grid=grid,
        in_specs=[
            pl.BlockSpec((C, W), lambda i: (0, i)),                # x slab
            pl.BlockSpec((1, W), lambda i: (0, i)),                # mask slab
            pl.BlockSpec((C, N_CHAN_PARAMS), lambda i: (0, 0)),    # packed params
            pl.BlockSpec((C, C), lambda i: (0, 0)),                # scaled group matrix
            pl.BlockSpec((H, C), lambda i: (0, 0)),                # mlp w1 (bf16)
            pl.BlockSpec((H, 1), lambda i: (0, 0)),                # mlp b1
            pl.BlockSpec((C, H), lambda i: (0, 0)),                # mlp w2 (bf16)
            pl.BlockSpec((C, 1), lambda i: (0, 0)),                # mlp b2
        ],
        out_specs=pl.BlockSpec((C, W), lambda i: (0, i)),
    )
    out_slab = pl.pallas_call(
        kernel,
        out_shape=jax.ShapeDtypeStruct((C, B * T), x.dtype),
        grid_spec=grid_spec,
        compiler_params=pltpu.CompilerParams(
            dimension_semantics=("parallel",),
            vmem_limit_bytes=vmem_limit),
    )(x_slab, m_slab, cpar, gmat, w1, b1, w2, b2)

    out = jnp.transpose(out_slab.reshape(C, B, T), (1, 0, 2))
    return out, mask_f.astype(jnp.bool_)


def sgp_reference(x, mask, p):
    """Pure-JAX reference mirroring the PyTorch forward (defaults: stride=1, pdrop=0)."""
    hp = jax.lax.Precision.HIGHEST
    mask_f = mask.astype(x.dtype)
    mu = jnp.mean(x, axis=1, keepdims=True)
    res = x - mu
    sigma = jnp.mean(res ** 2, axis=1, keepdims=True)
    out = res / jnp.sqrt(sigma + LN_EPS)
    out = out * p["ln_w"][None, :, None] + p["ln_b"][None, :, None]

    def dwconv(v, w, b):
        C = v.shape[1]
        K = w.shape[1]
        y = jax.lax.conv_general_dilated(
            v, w[:, None, :], window_strides=(1,), padding=[(K // 2, K // 2)],
            dimension_numbers=("NCH", "OIH", "NCH"),
            feature_group_count=C, precision=hp)
        return y + b[None, :, None]

    psi = dwconv(out, p["psi_w"], p["psi_b"])
    convw = dwconv(out, p["convw_w"], p["convw_b"])
    convkw = dwconv(out, p["convkw_w"], p["convkw_b"])
    fc = out * p["fc_w"][None, :, None] + p["fc_b"][None, :, None]
    phi = jax.nn.relu(jnp.mean(out, axis=-1, keepdims=True) * p["gfc_w"][None, :, None]
                      + p["gfc_b"][None, :, None])
    out = fc * phi + (convw + convkw) * psi + out
    out = x * mask_f + out

    B, C, T = out.shape
    g = out.reshape(B, NUM_GROUPS, C // NUM_GROUPS, T)
    gm = jnp.mean(g, axis=(2, 3), keepdims=True)
    gv = jnp.mean((g - gm) ** 2, axis=(2, 3), keepdims=True)
    gn = ((g - gm) / jnp.sqrt(gv + GN_EPS)).reshape(B, C, T)
    gn = gn * p["gn_w"][None, :, None] + p["gn_b"][None, :, None]

    h = jnp.einsum("hc,bct->bht", p["w1"], gn, precision=hp) + p["b1"][None, :, None]
    h = jax.nn.gelu(h, approximate=False)
    mlp = jnp.einsum("ch,bht->bct", p["w2"], h, precision=hp) + p["b2"][None, :, None]
    out = out + mlp
    return out, mask.astype(jnp.bool_)


if __name__ == "__main__":
    B, C, T = 2, 32, 128          # n_embd=32 (divisible by 16 for GroupNorm), seq len 128
    H = 4 * C                     # n_hidden = 4 * n_embd ; n_out = n_embd
    key = jax.random.PRNGKey(0)
    ks = jax.random.split(key, 12)

    x = jax.random.normal(ks[0], (B, C, T), dtype=jnp.float32)
    mask = jax.random.uniform(ks[1], (B, 1, T)) > 0.25       # (B, 1, T) bool

    init_conv_vars = 1.0
    fan1, fan2 = 1.0 / np.sqrt(C), 1.0 / np.sqrt(H)
    params = {
        "ln_w": jnp.ones((C,), jnp.float32), "ln_b": jnp.zeros((C,), jnp.float32),
        "gn_w": jnp.ones((C,), jnp.float32), "gn_b": jnp.zeros((C,), jnp.float32),
        "psi_w": init_conv_vars * jax.random.normal(ks[2], (C, K_SMALL), jnp.float32),
        "convw_w": init_conv_vars * jax.random.normal(ks[3], (C, K_SMALL), jnp.float32),
        "convkw_w": init_conv_vars * jax.random.normal(ks[4], (C, K_LARGE), jnp.float32),
        "fc_w": init_conv_vars * jax.random.normal(ks[5], (C,), jnp.float32),
        "gfc_w": init_conv_vars * jax.random.normal(ks[6], (C,), jnp.float32),
        "psi_b": jnp.zeros((C,), jnp.float32),
        "convw_b": jnp.zeros((C,), jnp.float32),
        "convkw_b": jnp.zeros((C,), jnp.float32),
        "fc_b": jnp.zeros((C,), jnp.float32),
        "gfc_b": jnp.zeros((C,), jnp.float32),
        "w1": fan1 * jax.random.uniform(ks[7], (H, C), jnp.float32, -1.0, 1.0),
        "b1": fan1 * jax.random.uniform(ks[8], (H,), jnp.float32, -1.0, 1.0),
        "w2": fan2 * jax.random.uniform(ks[9], (C, H), jnp.float32, -1.0, 1.0),
        "b2": fan2 * jax.random.uniform(ks[10], (C,), jnp.float32, -1.0, 1.0),
    }

    out, out_mask = sgp_block_forward(x, mask, params)
    jax.block_until_ready(out)

    ref_out, ref_mask = sgp_reference(x, mask, params)
    np.testing.assert_allclose(np.asarray(out), np.asarray(ref_out), rtol=2e-2, atol=2e-2)
    assert bool(jnp.all(out_mask == ref_mask))
    print("KERNEL_OK")
</pallas_src>

<mosaic_0001>
module attributes {stable_mosaic.version = 11 : i64} {
  func.func @kernel(%arg0: i32, %arg1: memref<32x256xf32, #tpu.memory_space<vmem>>, %arg2: memref<1x256xf32, #tpu.memory_space<vmem>>, %arg3: memref<32x20xf32, #tpu.memory_space<vmem>>, %arg4: memref<32x32xf32, #tpu.memory_space<vmem>>, %arg5: memref<128x32xbf16, #tpu.memory_space<vmem>>, %arg6: memref<128x1xf32, #tpu.memory_space<vmem>>, %arg7: memref<32x128xbf16, #tpu.memory_space<vmem>>, %arg8: memref<32x1xf32, #tpu.memory_space<vmem>>, %arg9: memref<32x256xf32, #tpu.memory_space<vmem>>) attributes {dimension_semantics = [#tpu.dimension_semantics<parallel>], iteration_bounds = array<i64: 1>, scalar_prefetch = 0 : i64, scratch_operands = 0 : i64, tpu.core_type = #tpu.core_type<tc>, window_params = [{transform_indices = @transform_0, window_bounds = array<i64: 32, 256>}, {transform_indices = @transform_1, window_bounds = array<i64: 1, 256>}, {pipeline_mode = #tpu.pipeline_mode<synchronous>, transform_indices = @transform_2, window_bounds = array<i64: 32, 20>}, {pipeline_mode = #tpu.pipeline_mode<synchronous>, transform_indices = @transform_3, window_bounds = array<i64: 32, 32>}, {pipeline_mode = #tpu.pipeline_mode<synchronous>, transform_indices = @transform_4, window_bounds = array<i64: 128, 32>}, {pipeline_mode = #tpu.pipeline_mode<synchronous>, transform_indices = @transform_5, window_bounds = array<i64: 128, 1>}, {pipeline_mode = #tpu.pipeline_mode<synchronous>, transform_indices = @transform_6, window_bounds = array<i64: 32, 128>}, {pipeline_mode = #tpu.pipeline_mode<synchronous>, transform_indices = @transform_7, window_bounds = array<i64: 32, 1>}, {transform_indices = @transform_8, window_bounds = array<i64: 32, 256>}]} {
    %c0 = arith.constant 0 : index
    %c0_0 = arith.constant 0 : index
    %0 = vector.load %arg1[%c0, %c0_0] : memref<32x256xf32, #tpu.memory_space<vmem>>, vector<32x256xf32>
    %c0_1 = arith.constant 0 : index
    %c0_2 = arith.constant 0 : index
    %1 = vector.load %arg2[%c0_1, %c0_2] : memref<1x256xf32, #tpu.memory_space<vmem>>, vector<1x256xf32>
    %c0_3 = arith.constant 0 : index
    %c0_4 = arith.constant 0 : index
    %2 = vector.load %arg3[%c0_3, %c0_4] : memref<32x20xf32, #tpu.memory_space<vmem>>, vector<32x20xf32>
    %cst = arith.constant dense<0.000000e+00> : vector<256xf32>
    %3 = vector.multi_reduction <add>, %0, %cst [0] : vector<32x256xf32> to vector<256xf32>
    %4 = vector.shape_cast %3 : vector<256xf32> to vector<1x256xf32>
    %cst_5 = arith.constant 3.200000e+01 : f32
    %5 = vector.broadcast %cst_5 : f32 to vector<1x256xf32>
    %6 = arith.divf %4, %5 : vector<1x256xf32>
    %7 = vector.broadcast %6 : vector<1x256xf32> to vector<32x256xf32>
    %8 = arith.subf %0, %7 : vector<32x256xf32>
    %9 = arith.mulf %8, %8 : vector<32x256xf32>
    %cst_6 = arith.constant dense<0.000000e+00> : vector<256xf32>
    %10 = vector.multi_reduction <add>, %9, %cst_6 [0] : vector<32x256xf32> to vector<256xf32>
    %11 = vector.shape_cast %10 : vector<256xf32> to vector<1x256xf32>
    %cst_7 = arith.constant 3.200000e+01 : f32
    %12 = vector.broadcast %cst_7 : f32 to vector<1x256xf32>
    %13 = arith.divf %11, %12 : vector<1x256xf32>
    %cst_8 = arith.constant 9.99999974E-6 : f32
    %14 = vector.broadcast %cst_8 : f32 to vector<1x256xf32>
    %15 = arith.addf %13, %14 : vector<1x256xf32>
    %16 = math.rsqrt %15 : vector<1x256xf32>
    %17 = vector.broadcast %16 : vector<1x256xf32> to vector<32x256xf32>
    %18 = arith.mulf %8, %17 : vector<32x256xf32>
    %19 = vector.extract_strided_slice %2 {offsets = [0, 0], sizes = [32, 1], strides = [1, 1]} : vector<32x20xf32> to vector<32x1xf32>
    %20 = vector.broadcast %19 : vector<32x1xf32> to vector<32x256xf32>
    %21 = arith.mulf %18, %20 : vector<32x256xf32>
    %22 = vector.extract_strided_slice %2 {offsets = [0, 1], sizes = [32, 1], strides = [1, 1]} : vector<32x20xf32> to vector<32x1xf32>
    %23 = vector.broadcast %22 : vector<32x1xf32> to vector<32x256xf32>
    %24 = arith.addf %21, %23 : vector<32x256xf32>
    %25 = tpu.iota {dimensions = array<i32: 1>} : vector<1x128xi32>
    %26 = tpu.concatenate %25, %25 in 1 : vector<1x128xi32>, vector<1x128xi32> -> vector<1x256xi32>
    %c0_i32 = arith.constant 0 : i32
    %27 = vector.broadcast %c0_i32 : i32 to vector<1x128xi32>
    %c1_i32 = arith.constant 1 : i32
    %28 = vector.broadcast %c1_i32 : i32 to vector<1x128xi32>
    %29 = tpu.concatenate %27, %28 in 1 : vector<1x128xi32>, vector<1x128xi32> -> vector<1x256xi32>
    %30 = tpu.iota {dimensions = array<i32: 0>} : vector<2x1xi32>
    %31 = vector.broadcast %29 : vector<1x256xi32> to vector<2x256xi32>
    %32 = vector.broadcast %30 : vector<2x1xi32> to vector<2x256xi32>
    %33 = arith.cmpi eq, %31, %32 : vector<2x256xi32>
    %34 = arith.extui %33 : vector<2x256xi1> to vector<2x256xi32>
    %35 = arith.sitofp %34 : vector<2x256xi32> to vector<2x256xf32>
    %36 = vector.extract_strided_slice %2 {offsets = [0, 11], sizes = [32, 1], strides = [1, 1]} : vector<32x20xf32> to vector<32x1xf32>
    %37 = vector.broadcast %36 : vector<32x1xf32> to vector<32x256xf32>
    %38 = arith.mulf %24, %37 : vector<32x256xf32>
    %39 = vector.extract_strided_slice %2 {offsets = [0, 8], sizes = [32, 1], strides = [1, 1]} : vector<32x20xf32> to vector<32x1xf32>
    %40 = vector.broadcast %39 : vector<32x1xf32> to vector<32x256xf32>
    %41 = arith.addf %38, %40 : vector<32x256xf32>
    %42 = vector.extract_strided_slice %2 {offsets = [0, 16], sizes = [32, 1], strides = [1, 1]} : vector<32x20xf32> to vector<32x1xf32>
    %43 = vector.broadcast %42 : vector<32x1xf32> to vector<32x256xf32>
    %44 = arith.mulf %24, %43 : vector<32x256xf32>
    %45 = vector.extract_strided_slice %2 {offsets = [0, 9], sizes = [32, 1], strides = [1, 1]} : vector<32x20xf32> to vector<32x1xf32>
    %46 = vector.broadcast %45 : vector<32x1xf32> to vector<32x256xf32>
    %47 = arith.addf %44, %46 : vector<32x256xf32>
    %c3_i32 = arith.constant 3 : i32
    %48 = vector.broadcast %c3_i32 : i32 to vector<1x256xi32>
    %49 = arith.cmpi sge, %26, %48 : vector<1x256xi32>
    %c3_i32_9 = arith.constant 3 : i32
    %50 = tpu.dynamic_rotate %24 by %c3_i32_9 dim 1 : vector<32x256xf32>, i32 -> vector<32x256xf32>
    %51 = arith.extui %49 : vector<1x256xi1> to vector<1x256xi32>
    %52 = arith.sitofp %51 : vector<1x256xi32> to vector<1x256xf32>
    %53 = vector.broadcast %52 : vector<1x256xf32> to vector<32x256xf32>
    %54 = arith.mulf %50, %53 : vector<32x256xf32>
    %55 = vector.extract_strided_slice %2 {offsets = [0, 13], sizes = [32, 1], strides = [1, 1]} : vector<32x20xf32> to vector<32x1xf32>
    %56 = vector.broadcast %55 : vector<32x1xf32> to vector<32x256xf32>
    %57 = arith.mulf %56, %54 : vector<32x256xf32>
    %58 = arith.addf %47, %57 : vector<32x256xf32>
    %c2_i32 = arith.constant 2 : i32
    %59 = vector.broadcast %c2_i32 : i32 to vector<1x256xi32>
    %60 = arith.cmpi sge, %26, %59 : vector<1x256xi32>
    %c2_i32_10 = arith.constant 2 : i32
    %61 = tpu.dynamic_rotate %24 by %c2_i32_10 dim 1 : vector<32x256xf32>, i32 -> vector<32x256xf32>
    %62 = arith.extui %60 : vector<1x256xi1> to vector<1x256xi32>
    %63 = arith.sitofp %62 : vector<1x256xi32> to vector<1x256xf32>
    %64 = vector.broadcast %63 : vector<1x256xf32> to vector<32x256xf32>
    %65 = arith.mulf %61, %64 : vector<32x256xf32>
    %66 = vector.extract_strided_slice %2 {offsets = [0, 14], sizes = [32, 1], strides = [1, 1]} : vector<32x20xf32> to vector<32x1xf32>
    %67 = vector.broadcast %66 : vector<32x1xf32> to vector<32x256xf32>
    %68 = arith.mulf %67, %65 : vector<32x256xf32>
    %69 = arith.addf %58, %68 : vector<32x256xf32>
    %c1_i32_11 = arith.constant 1 : i32
    %70 = vector.broadcast %c1_i32_11 : i32 to vector<1x256xi32>
    %71 = arith.cmpi sge, %26, %70 : vector<1x256xi32>
    %c1_i32_12 = arith.constant 1 : i32
    %72 = tpu.dynamic_rotate %24 by %c1_i32_12 dim 1 : vector<32x256xf32>, i32 -> vector<32x256xf32>
    %73 = arith.extui %71 : vector<1x256xi1> to vector<1x256xi32>
    %74 = arith.sitofp %73 : vector<1x256xi32> to vector<1x256xf32>
    %75 = vector.broadcast %74 : vector<1x256xf32> to vector<32x256xf32>
    %76 = arith.mulf %72, %75 : vector<32x256xf32>
    %77 = vector.extract_strided_slice %2 {offsets = [0, 10], sizes = [32, 1], strides = [1, 1]} : vector<32x20xf32> to vector<32x1xf32>
    %78 = vector.broadcast %77 : vector<32x1xf32> to vector<32x256xf32>
    %79 = arith.mulf %78, %76 : vector<32x256xf32>
    %80 = arith.addf %41, %79 : vector<32x256xf32>
    %81 = vector.extract_strided_slice %2 {offsets = [0, 15], sizes = [32, 1], strides = [1, 1]} : vector<32x20xf32> to vector<32x1xf32>
    %82 = vector.broadcast %81 : vector<32x1xf32> to vector<32x256xf32>
    %83 = arith.mulf %82, %76 : vector<32x256xf32>
    %84 = arith.addf %69, %83 : vector<32x256xf32>
    %c127_i32 = arith.constant 127 : i32
    %85 = vector.broadcast %c127_i32 : i32 to vector<1x256xi32>
    %86 = arith.cmpi slt, %26, %85 : vector<1x256xi32>
    %c255_i32 = arith.constant 255 : i32
    %87 = tpu.dynamic_rotate %24 by %c255_i32 dim 1 : vector<32x256xf32>, i32 -> vector<32x256xf32>
    %88 = arith.extui %86 : vector<1x256xi1> to vector<1x256xi32>
    %89 = arith.sitofp %88 : vector<1x256xi32> to vector<1x256xf32>
    %90 = vector.broadcast %89 : vector<1x256xf32> to vector<32x256xf32>
    %91 = arith.mulf %87, %90 : vector<32x256xf32>
    %92 = vector.extract_strided_slice %2 {offsets = [0, 12], sizes = [32, 1], strides = [1, 1]} : vector<32x20xf32> to vector<32x1xf32>
    %93 = vector.broadcast %92 : vector<32x1xf32> to vector<32x256xf32>
    %94 = arith.mulf %93, %91 : vector<32x256xf32>
    %95 = arith.addf %80, %94 : vector<32x256xf32>
    %96 = vector.extract_strided_slice %2 {offsets = [0, 17], sizes = [32, 1], strides = [1, 1]} : vector<32x20xf32> to vector<32x1xf32>
    %97 = vector.broadcast %96 : vector<32x1xf32> to vector<32x256xf32>
    %98 = arith.mulf %97, %91 : vector<32x256xf32>
    %99 = arith.addf %84, %98 : vector<32x256xf32>
    %c126_i32 = arith.constant 126 : i32
    %100 = vector.broadcast %c126_i32 : i32 to vector<1x256xi32>
    %101 = arith.cmpi slt, %26, %100 : vector<1x256xi32>
    %c254_i32 = arith.constant 254 : i32
    %102 = tpu.dynamic_rotate %24 by %c254_i32 dim 1 : vector<32x256xf32>, i32 -> vector<32x256xf32>
    %103 = arith.extui %101 : vector<1x256xi1> to vector<1x256xi32>
    %104 = arith.sitofp %103 : vector<1x256xi32> to vector<1x256xf32>
    %105 = vector.broadcast %104 : vector<1x256xf32> to vector<32x256xf32>
    %106 = arith.mulf %102, %105 : vector<32x256xf32>
    %107 = vector.extract_strided_slice %2 {offsets = [0, 18], sizes = [32, 1], strides = [1, 1]} : vector<32x20xf32> to vector<32x1xf32>
    %108 = vector.broadcast %107 : vector<32x1xf32> to vector<32x256xf32>
    %109 = arith.mulf %108, %106 : vector<32x256xf32>
    %110 = arith.addf %99, %109 : vector<32x256xf32>
    %c125_i32 = arith.constant 125 : i32
    %111 = vector.broadcast %c125_i32 : i32 to vector<1x256xi32>
    %112 = arith.cmpi slt, %26, %111 : vector<1x256xi32>
    %c253_i32 = arith.constant 253 : i32
    %113 = tpu.dynamic_rotate %24 by %c253_i32 dim 1 : vector<32x256xf32>, i32 -> vector<32x256xf32>
    %114 = arith.extui %112 : vector<1x256xi1> to vector<1x256xi32>
    %115 = arith.sitofp %114 : vector<1x256xi32> to vector<1x256xf32>
    %116 = vector.broadcast %115 : vector<1x256xf32> to vector<32x256xf32>
    %117 = arith.mulf %113, %116 : vector<32x256xf32>
    %118 = vector.extract_strided_slice %2 {offsets = [0, 19], sizes = [32, 1], strides = [1, 1]} : vector<32x20xf32> to vector<32x1xf32>
    %119 = vector.broadcast %118 : vector<32x1xf32> to vector<32x256xf32>
    %120 = arith.mulf %119, %117 : vector<32x256xf32>
    %121 = arith.addf %110, %120 : vector<32x256xf32>
    %122 = vector.extract_strided_slice %2 {offsets = [0, 2], sizes = [32, 1], strides = [1, 1]} : vector<32x20xf32> to vector<32x1xf32>
    %123 = vector.broadcast %122 : vector<32x1xf32> to vector<32x256xf32>
    %124 = arith.mulf %24, %123 : vector<32x256xf32>
    %125 = vector.extract_strided_slice %2 {offsets = [0, 3], sizes = [32, 1], strides = [1, 1]} : vector<32x20xf32> to vector<32x1xf32>
    %126 = vector.broadcast %125 : vector<32x1xf32> to vector<32x256xf32>
    %127 = arith.addf %124, %126 : vector<32x256xf32>
    "tpu.trace_start"() <{level = 10 : i32, message = "cw,bw->cb"}> : () -> ()
    %cst_13 = arith.constant dense<0.000000e+00> : vector<32x2xf32>
    %128 = tpu.matmul %24, %35, %cst_13 {dimension_numbers = #tpu.dot_dimension_numbers<[1], [1], [0], [0], [0, 0, 1, 0], [], []>} : vector<32x256xf32>, vector<2x256xf32>, vector<32x2xf32> -> vector<32x2xf32>
    "tpu.trace_stop"() : () -> ()
    %cst_14 = arith.constant 7.812500e-03 : f32
    %129 = vector.broadcast %cst_14 : f32 to vector<32x2xf32>
    %130 = arith.mulf %128, %129 : vector<32x2xf32>
    %131 = vector.extract_strided_slice %2 {offsets = [0, 4], sizes = [32, 1], strides = [1, 1]} : vector<32x20xf32> to vector<32x1xf32>
    %132 = vector.broadcast %131 : vector<32x1xf32> to vector<32x2xf32>
    %133 = arith.mulf %130, %132 : vector<32x2xf32>
    %134 = vector.extract_strided_slice %2 {offsets = [0, 5], sizes = [32, 1], strides = [1, 1]} : vector<32x20xf32> to vector<32x1xf32>
    %135 = vector.broadcast %134 : vector<32x1xf32> to vector<32x2xf32>
    %136 = arith.addf %133, %135 : vector<32x2xf32>
    %cst_15 = arith.constant 0.000000e+00 : f32
    %137 = vector.broadcast %cst_15 : f32 to vector<32x2xf32>
    %138 = arith.maximumf %136, %137 : vector<32x2xf32>
    "tpu.trace_start"() <{level = 10 : i32, message = "cb,bw->cw"}> : () -> ()
    %cst_16 = arith.constant dense<0.000000e+00> : vector<32x256xf32>
    %139 = tpu.matmul %138, %35, %cst_16 {dimension_numbers = #tpu.dot_dimension_numbers<[1], [0], [0], [1], [0, 0, 1, 1], [], []>} : vector<32x2xf32>, vector<2x256xf32>, vector<32x256xf32> -> vector<32x256xf32>
    "tpu.trace_stop"() : () -> ()
    %140 = arith.mulf %127, %139 : vector<32x256xf32>
    %141 = arith.mulf %121, %95 : vector<32x256xf32>
    %142 = arith.addf %140, %141 : vector<32x256xf32>
    %143 = arith.addf %142, %24 : vector<32x256xf32>
    %144 = vector.broadcast %1 : vector<1x256xf32> to vector<32x256xf32>
    %145 = arith.mulf %0, %144 : vector<32x256xf32>
    %146 = arith.addf %145, %143 : vector<32x256xf32>
    "tpu.trace_start"() <{level = 10 : i32, message = "cw,bw->cb"}> : () -> ()
    %cst_17 = arith.constant dense<0.000000e+00> : vector<32x2xf32>
    %147 = tpu.matmul %146, %35, %cst_17 {dimension_numbers = #tpu.dot_dimension_numbers<[1], [1], [0], [0], [0, 0, 1, 0], [], []>} : vector<32x256xf32>, vector<2x256xf32>, vector<32x2xf32> -> vector<32x2xf32>
    "tpu.trace_stop"() : () -> ()
    %148 = arith.mulf %146, %146 : vector<32x256xf32>
    "tpu.trace_start"() <{level = 10 : i32, message = "cw,bw->cb"}> : () -> ()
    %cst_18 = arith.constant dense<0.000000e+00> : vector<32x2xf32>
    %149 = tpu.matmul %148, %35, %cst_18 {dimension_numbers = #tpu.dot_dimension_numbers<[1], [1], [0], [0], [0, 0, 1, 0], [], []>} : vector<32x256xf32>, vector<2x256xf32>, vector<32x2xf32> -> vector<32x2xf32>
    "tpu.trace_stop"() : () -> ()
    %c0_19 = arith.constant 0 : index
    %c0_20 = arith.constant 0 : index
    %150 = vector.load %arg4[%c0_19, %c0_20] : memref<32x32xf32, #tpu.memory_space<vmem>>, vector<32x32xf32>
    %151 = tpu.concatenate %147, %149 in 1 : vector<32x2xf32>, vector<32x2xf32> -> vector<32x4xf32>
    %cst_21 = arith.constant dense<0.000000e+00> : vector<32x4xf32>
    %152 = tpu.matmul %150, %151, %cst_21 {dimension_numbers = #tpu.dot_dimension_numbers<[1], [0], [0], [1], [0, 0, 1, 1], [], []>} : vector<32x32xf32>, vector<32x4xf32>, vector<32x4xf32> -> vector<32x4xf32>
    %153 = vector.extract_strided_slice %152 {offsets = [0, 0], sizes = [32, 2], strides = [1, 1]} : vector<32x4xf32> to vector<32x2xf32>
    %154 = vector.extract_strided_slice %152 {offsets = [0, 2], sizes = [32, 2], strides = [1, 1]} : vector<32x4xf32> to vector<32x2xf32>
    %155 = arith.mulf %153, %153 : vector<32x2xf32>
    %156 = arith.subf %154, %155 : vector<32x2xf32>
    %cst_22 = arith.constant 9.99999974E-6 : f32
    %157 = vector.broadcast %cst_22 : f32 to vector<32x2xf32>
    %158 = arith.addf %156, %157 : vector<32x2xf32>
    %159 = math.rsqrt %158 : vector<32x2xf32>
    "tpu.trace_start"() <{level = 10 : i32, message = "cb,bw->cw"}> : () -> ()
    %cst_23 = arith.constant dense<0.000000e+00> : vector<32x256xf32>
    %160 = tpu.matmul %153, %35, %cst_23 {dimension_numbers = #tpu.dot_dimension_numbers<[1], [0], [0], [1], [0, 0, 1, 1], [], []>} : vector<32x2xf32>, vector<2x256xf32>, vector<32x256xf32> -> vector<32x256xf32>
    %cst_24 = arith.constant dense<0.000000e+00> : vector<32x256xf32>
    %161 = tpu.matmul %159, %35, %cst_24 {dimension_numbers = #tpu.dot_dimension_numbers<[1], [0], [0], [1], [0, 0, 1, 1], [], []>} : vector<32x2xf32>, vector<2x256xf32>, vector<32x256xf32> -> vector<32x256xf32>
    "tpu.trace_stop"() : () -> ()
    %162 = arith.subf %146, %160 : vector<32x256xf32>
    %163 = arith.mulf %162, %161 : vector<32x256xf32>
    %164 = vector.extract_strided_slice %2 {offsets = [0, 6], sizes = [32, 1], strides = [1, 1]} : vector<32x20xf32> to vector<32x1xf32>
    %165 = vector.broadcast %164 : vector<32x1xf32> to vector<32x256xf32>
    %166 = arith.mulf %163, %165 : vector<32x256xf32>
    %167 = vector.extract_strided_slice %2 {offsets = [0, 7], sizes = [32, 1], strides = [1, 1]} : vector<32x20xf32> to vector<32x1xf32>
    %168 = vector.broadcast %167 : vector<32x1xf32> to vector<32x256xf32>
    %169 = arith.addf %166, %168 : vector<32x256xf32>
    %c0_25 = arith.constant 0 : index
    %c0_26 = arith.constant 0 : index
    %170 = vector.load %arg5[%c0_25, %c0_26] : memref<128x32xbf16, #tpu.memory_space<vmem>>, vector<128x32xbf16>
    %171 = arith.truncf %169 : vector<32x256xf32> to vector<32x256xbf16>
    %cst_27 = arith.constant dense<0.000000e+00> : vector<128x256xf32>
    %172 = tpu.matmul %170, %171, %cst_27 {dimension_numbers = #tpu.dot_dimension_numbers<[1], [0], [0], [1], [0, 0, 1, 1], [], []>} : vector<128x32xbf16>, vector<32x256xbf16>, vector<128x256xf32> -> vector<128x256xf32>
    %c0_28 = arith.constant 0 : index
    %c0_29 = arith.constant 0 : index
    %173 = vector.load %arg6[%c0_28, %c0_29] : memref<128x1xf32, #tpu.memory_space<vmem>>, vector<128x1xf32>
    %174 = vector.broadcast %173 : vector<128x1xf32> to vector<128x256xf32>
    %175 = arith.addf %172, %174 : vector<128x256xf32>
    %cst_30 = arith.constant 5.000000e-01 : f32
    %176 = vector.broadcast %cst_30 : f32 to vector<128x256xf32>
    %177 = arith.mulf %176, %175 : vector<128x256xf32>
    %cst_31 = arith.constant 4.471500e-02 : f32
    %178 = vector.broadcast %cst_31 : f32 to vector<128x256xf32>
    %179 = arith.mulf %178, %175 : vector<128x256xf32>
    %180 = arith.mulf %179, %175 : vector<128x256xf32>
    %181 = arith.mulf %180, %175 : vector<128x256xf32>
    %182 = arith.addf %175, %181 : vector<128x256xf32>
    %cst_32 = arith.constant 0.797884583 : f32
    %183 = vector.broadcast %cst_32 : f32 to vector<128x256xf32>
    %184 = arith.mulf %183, %182 : vector<128x256xf32>
    %185 = math.tanh %184 : vector<128x256xf32>
    %cst_33 = arith.constant 1.000000e+00 : f32
    %186 = vector.broadcast %cst_33 : f32 to vector<128x256xf32>
    %187 = arith.addf %186, %185 : vector<128x256xf32>
    %188 = arith.mulf %177, %187 : vector<128x256xf32>
    %c0_34 = arith.constant 0 : index
    %c0_35 = arith.constant 0 : index
    %189 = vector.load %arg7[%c0_34, %c0_35] : memref<32x128xbf16, #tpu.memory_space<vmem>>, vector<32x128xbf16>
    %190 = arith.truncf %188 : vector<128x256xf32> to vector<128x256xbf16>
    %cst_36 = arith.constant dense<0.000000e+00> : vector<32x256xf32>
    %191 = tpu.matmul %189, %190, %cst_36 {dimension_numbers = #tpu.dot_dimension_numbers<[1], [0], [0], [1], [0, 0, 1, 1], [], []>} : vector<32x128xbf16>, vector<128x256xbf16>, vector<32x256xf32> -> vector<32x256xf32>
    %c0_37 = arith.constant 0 : index
    %c0_38 = arith.constant 0 : index
    %192 = vector.load %arg8[%c0_37, %c0_38] : memref<32x1xf32, #tpu.memory_space<vmem>>, vector<32x1xf32>
    %193 = vector.broadcast %192 : vector<32x1xf32> to vector<32x256xf32>
    %194 = arith.addf %191, %193 : vector<32x256xf32>
    %195 = arith.addf %146, %194 : vector<32x256xf32>
    %c0_39 = arith.constant 0 : index
    %c0_40 = arith.constant 0 : index
    %196 = vector.load %arg9[%c0_39, %c0_40] : memref<32x256xf32, #tpu.memory_space<vmem>>, vector<32x256xf32>
    tpu.vector_store %arg9[%c0_39, %c0_40], %195 {strides = array<i32>} : memref<32x256xf32, #tpu.memory_space<vmem>>, vector<32x256xf32>,
    return
  }
  func.func @transform_0(%arg0: i32) -> (i32, i32) {
    %c0_i32 = arith.constant 0 : i32
    %c0_i32_0 = arith.constant 0 : i32
    return %c0_i32, %arg0 : i32, i32
  }
  func.func @transform_1(%arg0: i32) -> (i32, i32) {
    %c0_i32 = arith.constant 0 : i32
    %c0_i32_0 = arith.constant 0 : i32
    return %c0_i32, %arg0 : i32, i32
  }
  func.func @transform_2(%arg0: i32) -> (i32, i32) {
    %c0_i32 = arith.constant 0 : i32
    %c0_i32_0 = arith.constant 0 : i32
    %c0_i32_1 = arith.constant 0 : i32
    return %c0_i32, %c0_i32_0 : i32, i32
  }
  func.func @transform_3(%arg0: i32) -> (i32, i32) {
    %c0_i32 = arith.constant 0 : i32
    %c0_i32_0 = arith.constant 0 : i32
    %c0_i32_1 = arith.constant 0 : i32
    return %c0_i32, %c0_i32_0 : i32, i32
  }
  func.func @transform_4(%arg0: i32) -> (i32, i32) {
    %c0_i32 = arith.constant 0 : i32
    %c0_i32_0 = arith.constant 0 : i32
    %c0_i32_1 = arith.constant 0 : i32
    return %c0_i32, %c0_i32_0 : i32, i32
  }
  func.func @transform_5(%arg0: i32) -> (i32, i32) {
    %c0_i32 = arith.constant 0 : i32
    %c0_i32_0 = arith.constant 0 : i32
    %c0_i32_1 = arith.constant 0 : i32
    return %c0_i32, %c0_i32_0 : i32, i32
  }
  func.func @transform_6(%arg0: i32) -> (i32, i32) {
    %c0_i32 = arith.constant 0 : i32
    %c0_i32_0 = arith.constant 0 : i32
    %c0_i32_1 = arith.constant 0 : i32
    return %c0_i32, %c0_i32_0 : i32, i32
  }
  func.func @transform_7(%arg0: i32) -> (i32, i32) {
    %c0_i32 = arith.constant 0 : i32
    %c0_i32_0 = arith.constant 0 : i32
    %c0_i32_1 = arith.constant 0 : i32
    return %c0_i32, %c0_i32_0 : i32, i32
  }
  func.func @transform_8(%arg0: i32) -> (i32, i32) {
    %c0_i32 = arith.constant 0 : i32
    %c0_i32_0 = arith.constant 0 : i32
    return %c0_i32, %arg0 : i32, i32
  }
}

</mosaic_0001>

<llo_original>
// kernel: tpu_custom_call.1
$region0: #{tpu_custom_call.1}
  #allocation0 [shape = 'u32[]', space=smem, size = 0x4, offset = 0x4, fixed_abs, tag = 'smem constant byte address 0x4 - core index']
  #allocation1 [shape = 'u32[144,128]{1,0:T(1,128)}', space=vmem, size = 0x12000, scoped, tag = 'internal scratch']
  %s0 = inlined_call_operand.vmem [shape: f32[32,256], index: 0, kind: input, shape index: {}]
  %s1 = inlined_call_operand.vmem [shape: f32[1,256], index: 1, kind: input, shape index: {}]
  %s2 = inlined_call_operand.vmem [shape: f32[32,20], index: 2, kind: input, shape index: {}]
  %s3 = inlined_call_operand.vmem [shape: f32[32,32], index: 3, kind: input, shape index: {}]
  %s4 = inlined_call_operand.vmem [shape: bf16[128,32], index: 4, kind: input, shape index: {}]
  %s5 = inlined_call_operand.vmem [shape: f32[128,1], index: 5, kind: input, shape index: {}]
  %s6 = inlined_call_operand.vmem [shape: bf16[32,128], index: 6, kind: input, shape index: {}]
  %s7 = inlined_call_operand.vmem [shape: f32[32,1], index: 7, kind: input, shape index: {}]
  %s8 = inlined_call_operand.hbm [shape: f32[32,256], index: 8, kind: output, shape index: {}]
  %s9 = sld [smem:[#allocation0]]
  $region42: #{tpu_custom_call.1} parent=0
    _
  %s11 = ssub.s32 1, %s9
  %s12 = scalar_select 0, %s11, %s9
  $region1: #{tpu_custom_call.1} parent=0
    #allocation2 [shape = 'u8[32768]{0}', space=vmem, size = 0x8000, scoped, tag = 'output window, operand 0, single buffered']
    #allocation3 [shape = 's32[1]{0}', space=sflag, size = 0x4, scoped, tag = 'scoped memory for tpu_custom_call.1']
    %13 = vsyncpa [#allocation3], 0
    // Predicated region
    $region2: #{tpu_custom_call.1} parent=1 // pred_check
      _
    $region3: #{tpu_custom_call.1} parent=1 // pred_check_branch
      %15 = sbr.rel (0) target = $region5
    $region4: #{tpu_custom_call.1} parent=1 // pred_region
      _
    $region5: #{tpu_custom_call.1} parent=1 // pred_fallthru
      _
    // Predicated region
    $region6: #{tpu_custom_call.1} parent=1 // pred_check
      _
    $region7: #{tpu_custom_call.1} parent=1 // pred_check_branch
      %17 = sbr.rel (0) target = $region9
    $region8: #{tpu_custom_call.1} parent=1 // pred_region
      _
    $region9: #{tpu_custom_call.1} parent=1 // pred_fallthru
      _
    // Predicated region
    $region10: #{tpu_custom_call.1} parent=1 // pred_check
      _
    $region11: #{tpu_custom_call.1} parent=1 // pred_check_branch
      %19 = sbr.rel (0) target = $region13
    $region12: #{tpu_custom_call.1} parent=1 // pred_region
      _
    $region13: #{tpu_custom_call.1} parent=1 // pred_fallthru
      _
    // Predicated region
    $region14: #{tpu_custom_call.1} parent=1 // pred_check
      _
    $region15: #{tpu_custom_call.1} parent=1 // pred_check_branch
      %21 = sbr.rel (0) target = $region17
    $region16: #{tpu_custom_call.1} parent=1 // pred_region
      _
    $region17: #{tpu_custom_call.1} parent=1 // pred_fallthru
      _
    // Predicated region
    $region18: #{tpu_custom_call.1} parent=1 // pred_check
      _
    $region19: #{tpu_custom_call.1} parent=1 // pred_check_branch
      %23 = sbr.rel (0) target = $region21
    $region20: #{tpu_custom_call.1} parent=1 // pred_region
      _
    $region21: #{tpu_custom_call.1} parent=1 // pred_fallthru
      _
    // Predicated region
    $region22: #{tpu_custom_call.1} parent=1 // pred_check
      _
    $region23: #{tpu_custom_call.1} parent=1 // pred_check_branch
      %25 = sbr.rel (0) target = $region25
    $region24: #{tpu_custom_call.1} parent=1 // pred_region
      _
    $region25: #{tpu_custom_call.1} parent=1 // pred_fallthru
      _
    // Predicated region
    $region26: #{tpu_custom_call.1} parent=1 // pred_check
      _
    $region27: #{tpu_custom_call.1} parent=1 // pred_check_branch
      %27 = sbr.rel (0) target = $region29
    $region28: #{tpu_custom_call.1} parent=1 // pred_region
      _
    $region29: #{tpu_custom_call.1} parent=1 // pred_fallthru
      _
    // Predicated region
    $region30: #{tpu_custom_call.1} parent=1 // pred_check
      _
    $region31: #{tpu_custom_call.1} parent=1 // pred_check_branch
      %29 = sbr.rel (0) target = $region33
    $region32: #{tpu_custom_call.1} parent=1 // pred_region
      _
    $region33: #{tpu_custom_call.1} parent=1 // pred_fallthru
      _
    %v31 = vld [vmem:[%s0] sm:$0xff]
    %v32 = vld [vmem:[%s0 + $0x8] sm:$0xff]
    %v33 = vld [vmem:[%s0 + $0x10] sm:$0xff]
    %v34 = vld [vmem:[%s0 + $0x18] sm:$0xff]
    %v35 = vld [vmem:[%s0 + $0x20] sm:$0xff]
    %v36 = vld [vmem:[%s0 + $0x28] sm:$0xff]
    %v37 = vld [vmem:[%s0 + $0x30] sm:$0xff]
    %v38 = vld [vmem:[%s0 + $0x38] sm:$0xff]
    %v39 = vld [vmem:[%s1] sm:$0x3]
    %v40 = vld [vmem:[%s2] sm:$0xff]
    %v41 = vld [vmem:[%s2 + $0x8] sm:$0xff]
    %v42 = vld [vmem:[%s2 + $0x10] sm:$0xff]
    %v43 = vld [vmem:[%s2 + $0x18] sm:$0xff]
    %v44 = vadd.f32 %v31, %v33
    %v45 = vadd.f32 %v44, %v35
    %v46 = vadd.f32 %v45, %v37
    %v47 = vrot.slane %v46, 4
    %v48 = vadd.f32 %v46, %v47
    %v49 = vrot.slane %v48, 2
    %v50 = vadd.f32 %v48, %v49
    %v51 = vrot.slane %v50, 1
    %v52 = vadd.f32 %v50, %v51
    %v53 = vadd.f32 %v32, %v34
    %v54 = vadd.f32 %v53, %v36
    %v55 = vadd.f32 %v54, %v38
    %v56 = vrot.slane %v55, 4
    %v57 = vadd.f32 %v55, %v56
    %v58 = vrot.slane %v57, 2
    %v59 = vadd.f32 %v57, %v58
    %v60 = vrot.slane %v59, 1
    %v61 = vadd.f32 %v59, %v60
    %v62 = vrcp.pop 32.0
    %v63 = vmul.f32 %v52, %v62
    %v64 = vmul.f32 %v61, %v62
    %v65 = vsub.f32 %v31, %v63
    %v66 = vsub.f32 %v32, %v64
    %v67 = vsub.f32 %v33, %v63
    %v68 = vsub.f32 %v34, %v64
    %v69 = vsub.f32 %v35, %v63
    %v70 = vsub.f32 %v36, %v64
    %v71 = vsub.f32 %v37, %v63
    %v72 = vsub.f32 %v38, %v64
    %v73 = vmul.f32 %v65, %v65
    %v74 = vmul.f32 %v66, %v66
    %v75 = vmul.f32 %v67, %v67
    %v76 = vmul.f32 %v68, %v68
    %v77 = vmul.f32 %v69, %v69
    %v78 = vmul.f32 %v70, %v70
    %v79 = vmul.f32 %v71, %v71
    %v80 = vmul.f32 %v72, %v72
    %v81 = vadd.f32 %v73, %v75
    %v82 = vadd.f32 %v81, %v77
    %v83 = vadd.f32 %v82, %v79
    %v84 = vrot.slane %v83, 4
    %v85 = vadd.f32 %v83, %v84
    %v86 = vrot.slane %v85, 2
    %v87 = vadd.f32 %v85, %v86
    %v88 = vrot.slane %v87, 1
    %v89 = vadd.f32 %v87, %v88
    %v90 = vadd.f32 %v74, %v76
    %v91 = vadd.f32 %v90, %v78
    %v92 = vadd.f32 %v91, %v80
    %v93 = vrot.slane %v92, 4
    %v94 = vadd.f32 %v92, %v93
    %v95 = vrot.slane %v94, 2
    %v96 = vadd.f32 %v94, %v95
    %v97 = vrot.slane %v96, 1
    %v98 = vadd.f32 %v96, %v97
    %v99 = vmul.f32 %v89, %v62
    %v100 = vmul.f32 %v98, %v62
    %v101 = vadd.f32 %v99, 1e-05
    %v102 = vadd.f32 %v100, 1e-05
    %v103 = vrsqrt.pop %v101
    %v104 = vrsqrt.pop %v102
    %v105 = vmul.f32 %v65, %v103
    %v106 = vmul.f32 %v66, %v104
    %v107 = vmul.f32 %v67, %v103
    %v108 = vmul.f32 %v68, %v104
    %v109 = vmul.f32 %v69, %v103
    %v110 = vmul.f32 %v70, %v104
    %v111 = vmul.f32 %v71, %v103
    %v112 = vmul.f32 %v72, %v104
    %114 = vset.pattern.permute.xlu0 0
    %115 = vperm.xlu0 %114, %v40
    %v116 = vpop.permute.xlu0 %115
    %119 = vset.pattern.permute.xlu0 0
    %120 = vperm.xlu0 %119, %v41
    %v121 = vpop.permute.xlu0 %120
    %124 = vset.pattern.permute.xlu0 0
    %125 = vperm.xlu0 %124, %v42
    %v126 = vpop.permute.xlu0 %125
    %129 = vset.pattern.permute.xlu0 0
    %130 = vperm.xlu0 %129, %v43
    %v131 = vpop.permute.xlu0 %130
    %v133 = vmul.f32 %v105, %v116
    %v134 = vmul.f32 %v106, %v116
    %v135 = vmul.f32 %v107, %v121
    %v136 = vmul.f32 %v108, %v121
    %v137 = vmul.f32 %v109, %v126
    %v138 = vmul.f32 %v110, %v126
    %v139 = vmul.f32 %v111, %v131
    %v140 = vmul.f32 %v112, %v131
    %141 = vset.pattern.permute.xlu0 1
    %142 = vperm.xlu0 %141, %v40
    %v143 = vpop.permute.xlu0 %142
    %145 = vset.pattern.permute.xlu0 1
    %146 = vperm.xlu0 %145, %v41
    %v147 = vpop.permute.xlu0 %146
    %149 = vset.pattern.permute.xlu0 1
    %150 = vperm.xlu0 %149, %v42
    %v151 = vpop.permute.xlu0 %150
    %153 = vset.pattern.permute.xlu0 1
    %154 = vperm.xlu0 %153, %v43
    %v155 = vpop.permute.xlu0 %154
    %v157 = vadd.f32 %v133, %v143
    %v158 = vadd.f32 %v134, %v143
    %v159 = vadd.f32 %v135, %v147
    %v160 = vadd.f32 %v136, %v147
    %v161 = vadd.f32 %v137, %v151
    %v162 = vadd.f32 %v138, %v151
    %v163 = vadd.f32 %v139, %v155
    %v164 = vadd.f32 %v140, %v155
    %v165 = vlaneseq
    %v166 = vand.u32 %v165, 127
    %v167 = vlaneseq
    %v168 = vshrl.u32 %v167, 7
    %v169 = vlaneseq
    %v170 = vshrl.u32 %v169, 7
    %v171 = vsub.s32 0, %v170
    %v172 = vlaneseq
    %v173 = vshrl.u32 %v172, 7
    %v174 = vsub.s32 0, %v173
    %vm175 = vcmp.eq.s32.totalorder 0, %v168
    %vm176 = vcmp.eq.s32.totalorder 1, %v168
    %v177 = vsel %vm175, 1, 0
    %v178 = vsel %vm176, 1, 0
    %v179 = vcvt.s32.f32 %v177
    %v180 = vcvt.s32.f32 %v178
    %181 = vset.pattern.permute.xlu0 11
    %182 = vperm.xlu0 %181, %v40
    %v183 = vpop.permute.xlu0 %182
    %185 = vset.pattern.permute.xlu0 11
    %186 = vperm.xlu0 %185, %v41
    %v187 = vpop.permute.xlu0 %186
    %189 = vset.pattern.permute.xlu0 11
    %190 = vperm.xlu0 %189, %v42
    %v191 = vpop.permute.xlu0 %190
    %193 = vset.pattern.permute.xlu0 11
    %194 = vperm.xlu0 %193, %v43
    %v195 = vpop.permute.xlu0 %194
    %v197 = vmul.f32 %v157, %v183
    %v198 = vmul.f32 %v158, %v183
    %v199 = vmul.f32 %v159, %v187
    %v200 = vmul.f32 %v160, %v187
    %v201 = vmul.f32 %v161, %v191
    %v202 = vmul.f32 %v162, %v191
    %v203 = vmul.f32 %v163, %v195
    %v204 = vmul.f32 %v164, %v195
    %205 = vset.pattern.permute.xlu0 8
    %206 = vperm.xlu0 %205, %v40
    %v207 = vpop.permute.xlu0 %206
    %209 = vset.pattern.permute.xlu0 8
    %210 = vperm.xlu0 %209, %v41
    %v211 = vpop.permute.xlu0 %210
    %213 = vset.pattern.permute.xlu0 8
    %214 = vperm.xlu0 %213, %v42
    %v215 = vpop.permute.xlu0 %214
    %217 = vset.pattern.permute.xlu0 8
    %218 = vperm.xlu0 %217, %v43
    %v219 = vpop.permute.xlu0 %218
    %v221 = vadd.f32 %v197, %v207
    %v222 = vadd.f32 %v198, %v207
    %v223 = vadd.f32 %v199, %v211
    %v224 = vadd.f32 %v200, %v211
    %v225 = vadd.f32 %v201, %v215
    %v226 = vadd.f32 %v202, %v215
    %v227 = vadd.f32 %v203, %v219
    %v228 = vadd.f32 %v204, %v219
    %229 = vset.pattern.permute.xlu0 16
    %230 = vperm.xlu0 %229, %v40
    %v231 = vpop.permute.xlu0 %230
    %233 = vset.pattern.permute.xlu0 16
    %234 = vperm.xlu0 %233, %v41
    %v235 = vpop.permute.xlu0 %234
    %237 = vset.pattern.permute.xlu0 16
    %238 = vperm.xlu0 %237, %v42
    %v239 = vpop.permute.xlu0 %238
    %241 = vset.pattern.permute.xlu0 16
    %242 = vperm.xlu0 %241, %v43
    %v243 = vpop.permute.xlu0 %242
    %v245 = vmul.f32 %v157, %v231
    %v246 = vmul.f32 %v158, %v231
    %v247 = vmul.f32 %v159, %v235
    %v248 = vmul.f32 %v160, %v235
    %v249 = vmul.f32 %v161, %v239
    %v250 = vmul.f32 %v162, %v239
    %v251 = vmul.f32 %v163, %v243
    %v252 = vmul.f32 %v164, %v243
    %253 = vset.pattern.permute.xlu0 9
    %254 = vperm.xlu0 %253, %v40
    %v255 = vpop.permute.xlu0 %254
    %257 = vset.pattern.permute.xlu0 9
    %258 = vperm.xlu0 %257, %v41
    %v259 = vpop.permute.xlu0 %258
    %261 = vset.pattern.permute.xlu0 9
    %262 = vperm.xlu0 %261, %v42
    %v263 = vpop.permute.xlu0 %262
    %265 = vset.pattern.permute.xlu0 9
    %266 = vperm.xlu0 %265, %v43
    %v267 = vpop.permute.xlu0 %266
    %v269 = vadd.f32 %v245, %v255
    %v270 = vadd.f32 %v246, %v255
    %v271 = vadd.f32 %v247, %v259
    %v272 = vadd.f32 %v248, %v259
    %v273 = vadd.f32 %v249, %v263
    %v274 = vadd.f32 %v250, %v263
    %v275 = vadd.f32 %v251, %v267
    %v276 = vadd.f32 %v252, %v267
    %vm277 = vcmp.ge.s32.totalorder %v166, 3
    %278 = vrot.lane.b32.xlu0 %v157, 3
    %v279 = vpop.permute.xlu0 %278
    %280 = vrot.lane.b32.xlu0 %v159, 3
    %v281 = vpop.permute.xlu0 %280
    %282 = vrot.lane.b32.xlu0 %v161, 3
    %v283 = vpop.permute.xlu0 %282
    %284 = vrot.lane.b32.xlu0 %v163, 3
    %v285 = vpop.permute.xlu0 %284
    %286 = vrot.lane.b32.xlu0 %v158, 3
    %v287 = vpop.permute.xlu0 %286
    %288 = vrot.lane.b32.xlu0 %v160, 3
    %v289 = vpop.permute.xlu0 %288
    %290 = vrot.lane.b32.xlu0 %v162, 3
    %v291 = vpop.permute.xlu0 %290
    %292 = vrot.lane.b32.xlu0 %v164, 3
    %v293 = vpop.permute.xlu0 %292
    %vm294 = vcmp.lt.s32.totalorder %v166, 3
    %v295 = vsel %vm294, %v279, %v287
    %v296 = vsel %vm294, %v281, %v289
    %v297 = vsel %vm294, %v283, %v291
    %v298 = vsel %vm294, %v285, %v293
    %v299 = vsel %vm294, %v287, %v279
    %v300 = vsel %vm294, %v289, %v281
    %v301 = vsel %vm294, %v291, %v283
    %v302 = vsel %vm294, %v293, %v285
    %v303 = vsel %vm277, 1, 0
    %v304 = vcvt.s32.f32 %v303
    %v305 = vlaneseq
    %v306 = vshrl.u32 %v305, 7
    %v307 = vsub.s32 0, %v306
    %v308 = vrot.slane %v304, %v307
    %v309 = vmul.f32 %v299, %v308
    %v310 = vmul.f32 %v295, %v308
    %v311 = vmul.f32 %v300, %v308
    %v312 = vmul.f32 %v296, %v308
    %v313 = vmul.f32 %v301, %v308
    %v314 = vmul.f32 %v297, %v308
    %v315 = vmul.f32 %v302, %v308
    %v316 = vmul.f32 %v298, %v308
    %317 = vset.pattern.permute.xlu0 13
    %318 = vperm.xlu0 %317, %v40
    %v319 = vpop.permute.xlu0 %318
    %321 = vset.pattern.permute.xlu0 13
    %322 = vperm.xlu0 %321, %v41
    %v323 = vpop.permute.xlu0 %322
    %325 = vset.pattern.permute.xlu0 13
    %326 = vperm.xlu0 %325, %v42
    %v327 = vpop.permute.xlu0 %326
    %329 = vset.pattern.permute.xlu0 13
    %330 = vperm.xlu0 %329, %v43
    %v331 = vpop.permute.xlu0 %330
    %v333 = vmul.f32 %v319, %v309
    %v334 = vmul.f32 %v319, %v310
    %v335 = vmul.f32 %v323, %v311
    %v336 = vmul.f32 %v323, %v312
    %v337 = vmul.f32 %v327, %v313
    %v338 = vmul.f32 %v327, %v314
    %v339 = vmul.f32 %v331, %v315
    %v340 = vmul.f32 %v331, %v316
    %v341 = vadd.f32 %v269, %v333
    %v342 = vadd.f32 %v270, %v334
    %v343 = vadd.f32 %v271, %v335
    %v344 = vadd.f32 %v272, %v336
    %v345 = vadd.f32 %v273, %v337
    %v346 = vadd.f32 %v274, %v338
    %v347 = vadd.f32 %v275, %v339
    %v348 = vadd.f32 %v276, %v340
    %vm349 = vcmp.ge.s32.totalorder %v166, 2
    %350 = vrot.lane.b32.xlu0 %v157, 2
    %v351 = vpop.permute.xlu0 %350
    %352 = vrot.lane.b32.xlu0 %v159, 2
    %v353 = vpop.permute.xlu0 %352
    %354 = vrot.lane.b32.xlu0 %v161, 2
    %v355 = vpop.permute.xlu0 %354
    %356 = vrot.lane.b32.xlu0 %v163, 2
    %v357 = vpop.permute.xlu0 %356
    %358 = vrot.lane.b32.xlu0 %v158, 2
    %v359 = vpop.permute.xlu0 %358
    %360 = vrot.lane.b32.xlu0 %v160, 2
    %v361 = vpop.permute.xlu0 %360
    %362 = vrot.lane.b32.xlu0 %v162, 2
    %v363 = vpop.permute.xlu0 %362
    %364 = vrot.lane.b32.xlu0 %v164, 2
    %v365 = vpop.permute.xlu0 %364
    %vm366 = vcmp.lt.s32.totalorder %v166, 2
    %v367 = vsel %vm366, %v351, %v359
    %v368 = vsel %vm366, %v353, %v361
    %v369 = vsel %vm366, %v355, %v363
    %v370 = vsel %vm366, %v357, %v365
    %v371 = vsel %vm366, %v359, %v351
    %v372 = vsel %vm366, %v361, %v353
    %v373 = vsel %vm366, %v363, %v355
    %v374 = vsel %vm366, %v365, %v357
    %v375 = vsel %vm349, 1, 0
    %v376 = vcvt.s32.f32 %v375
    %v377 = vlaneseq
    %v378 = vshrl.u32 %v377, 7
    %v379 = vsub.s32 0, %v378
    %v380 = vrot.slane %v376, %v379
    %v381 = vmul.f32 %v371, %v380
    %v382 = vmul.f32 %v367, %v380
    %v383 = vmul.f32 %v372, %v380
    %v384 = vmul.f32 %v368, %v380
    %v385 = vmul.f32 %v373, %v380
    %v386 = vmul.f32 %v369, %v380
    %v387 = vmul.f32 %v374, %v380
    %v388 = vmul.f32 %v370, %v380
    %389 = vset.pattern.permute.xlu0 14
    %390 = vperm.xlu0 %389, %v40
    %v391 = vpop.permute.xlu0 %390
    %393 = vset.pattern.permute.xlu0 14
    %394 = vperm.xlu0 %393, %v41
    %v395 = vpop.permute.xlu0 %394
    %397 = vset.pattern.permute.xlu0 14
    %398 = vperm.xlu0 %397, %v42
    %v399 = vpop.permute.xlu0 %398
    %401 = vset.pattern.permute.xlu0 14
    %402 = vperm.xlu0 %401, %v43
    %v403 = vpop.permute.xlu0 %402
    %v405 = vmul.f32 %v391, %v381
    %v406 = vmul.f32 %v391, %v382
    %v407 = vmul.f32 %v395, %v383
    %v408 = vmul.f32 %v395, %v384
    %v409 = vmul.f32 %v399, %v385
    %v410 = vmul.f32 %v399, %v386
    %v411 = vmul.f32 %v403, %v387
    %v412 = vmul.f32 %v403, %v388
    %v413 = vadd.f32 %v341, %v405
    %v414 = vadd.f32 %v342, %v406
    %v415 = vadd.f32 %v343, %v407
    %v416 = vadd.f32 %v344, %v408
    %v417 = vadd.f32 %v345, %v409
    %v418 = vadd.f32 %v346, %v410
    %v419 = vadd.f32 %v347, %v411
    %v420 = vadd.f32 %v348, %v412
    %vm421 = vcmp.ge.s32.totalorder %v166, 1
    %422 = vrot.lane.b32.xlu0 %v157, 1
    %v423 = vpop.permute.xlu0 %422
    %424 = vrot.lane.b32.xlu0 %v159, 1
    %v425 = vpop.permute.xlu0 %424
    %426 = vrot.lane.b32.xlu0 %v161, 1
    %v427 = vpop.permute.xlu0 %426
    %428 = vrot.lane.b32.xlu0 %v163, 1
    %v429 = vpop.permute.xlu0 %428
    %430 = vrot.lane.b32.xlu0 %v158, 1
    %v431 = vpop.permute.xlu0 %430
    %432 = vrot.lane.b32.xlu0 %v160, 1
    %v433 = vpop.permute.xlu0 %432
    %434 = vrot.lane.b32.xlu0 %v162, 1
    %v435 = vpop.permute.xlu0 %434
    %436 = vrot.lane.b32.xlu0 %v164, 1
    %v437 = vpop.permute.xlu0 %436
    %vm438 = vcmp.lt.s32.totalorder %v166, 1
    %v439 = vsel %vm438, %v423, %v431
    %v440 = vsel %vm438, %v425, %v433
    %v441 = vsel %vm438, %v427, %v435
    %v442 = vsel %vm438, %v429, %v437
    %v443 = vsel %vm438, %v431, %v423
    %v444 = vsel %vm438, %v433, %v425
    %v445 = vsel %vm438, %v435, %v427
    %v446 = vsel %vm438, %v437, %v429
    %v447 = vsel %vm421, 1, 0
    %v448 = vcvt.s32.f32 %v447
    %v449 = vlaneseq
    %v450 = vshrl.u32 %v449, 7
    %v451 = vsub.s32 0, %v450
    %v452 = vrot.slane %v448, %v451
    %v453 = vmul.f32 %v443, %v452
    %v454 = vmul.f32 %v439, %v452
    %v455 = vmul.f32 %v444, %v452
    %v456 = vmul.f32 %v440, %v452
    %v457 = vmul.f32 %v445, %v452
    %v458 = vmul.f32 %v441, %v452
    %v459 = vmul.f32 %v446, %v452
    %v460 = vmul.f32 %v442, %v452
    %461 = vset.pattern.permute.xlu0 10
    %462 = vperm.xlu0 %461, %v40
    %v463 = vpop.permute.xlu0 %462
    %465 = vset.pattern.permute.xlu0 10
    %466 = vperm.xlu0 %465, %v41
    %v467 = vpop.permute.xlu0 %466
    %469 = vset.pattern.permute.xlu0 10
    %470 = vperm.xlu0 %469, %v42
    %v471 = vpop.permute.xlu0 %470
    %473 = vset.pattern.permute.xlu0 10
    %474 = vperm.xlu0 %473, %v43
    %v475 = vpop.permute.xlu0 %474
    %v477 = vmul.f32 %v463, %v453
    %v478 = vmul.f32 %v463, %v454
    %v479 = vmul.f32 %v467, %v455
    %v480 = vmul.f32 %v467, %v456
    %v481 = vmul.f32 %v471, %v457
    %v482 = vmul.f32 %v471, %v458
    %v483 = vmul.f32 %v475, %v459
    %v484 = vmul.f32 %v475, %v460
    %v485 = vadd.f32 %v221, %v477
    %v486 = vadd.f32 %v222, %v478
    %v487 = vadd.f32 %v223, %v479
    %v488 = vadd.f32 %v224, %v480
    %v489 = vadd.f32 %v225, %v481
    %v490 = vadd.f32 %v226, %v482
    %v491 = vadd.f32 %v227, %v483
    %v492 = vadd.f32 %v228, %v484
    %493 = vset.pattern.permute.xlu0 15
    %494 = vperm.xlu0 %493, %v40
    %v495 = vpop.permute.xlu0 %494
    %497 = vset.pattern.permute.xlu0 15
    %498 = vperm.xlu0 %497, %v41
    %v499 = vpop.permute.xlu0 %498
    %501 = vset.pattern.permute.xlu0 15
    %502 = vperm.xlu0 %501, %v42
    %v503 = vpop.permute.xlu0 %502
    %505 = vset.pattern.permute.xlu0 15
    %506 = vperm.xlu0 %505, %v43
    %v507 = vpop.permute.xlu0 %506
    %v509 = vmul.f32 %v495, %v453
    %v510 = vmul.f32 %v495, %v454
    %v511 = vmul.f32 %v499, %v455
    %v512 = vmul.f32 %v499, %v456
    %v513 = vmul.f32 %v503, %v457
    %v514 = vmul.f32 %v503, %v458
    %v515 = vmul.f32 %v507, %v459
    %v516 = vmul.f32 %v507, %v460
    %v517 = vadd.f32 %v413, %v509
    %v518 = vadd.f32 %v414, %v510
    %v519 = vadd.f32 %v415, %v511
    %v520 = vadd.f32 %v416, %v512
    %v521 = vadd.f32 %v417, %v513
    %v522 = vadd.f32 %v418, %v514
    %v523 = vadd.f32 %v419, %v515
    %v524 = vadd.f32 %v420, %v516
    %vm525 = vcmp.lt.s32.totalorder %v166, 127
    %526 = vrot.lane.b32.xlu0 %v157, 127
    %v527 = vpop.permute.xlu0 %526
    %528 = vrot.lane.b32.xlu0 %v159, 127
    %v529 = vpop.permute.xlu0 %528
    %530 = vrot.lane.b32.xlu0 %v161, 127
    %v531 = vpop.permute.xlu0 %530
    %532 = vrot.lane.b32.xlu0 %v163, 127
    %v533 = vpop.permute.xlu0 %532
    %534 = vrot.lane.b32.xlu0 %v158, 127
    %v535 = vpop.permute.xlu0 %534
    %536 = vrot.lane.b32.xlu0 %v160, 127
    %v537 = vpop.permute.xlu0 %536
    %538 = vrot.lane.b32.xlu0 %v162, 127
    %v539 = vpop.permute.xlu0 %538
    %540 = vrot.lane.b32.xlu0 %v164, 127
    %v541 = vpop.permute.xlu0 %540
    %v542 = vsel %vm525, %v527, %v535
    %v543 = vsel %vm525, %v529, %v537
    %v544 = vsel %vm525, %v531, %v539
    %v545 = vsel %vm525, %v533, %v541
    %v546 = vsel %vm525, %v535, %v527
    %v547 = vsel %vm525, %v537, %v529
    %v548 = vsel %vm525, %v539, %v531
    %v549 = vsel %vm525, %v541, %v533
    %v550 = vsel %vm525, 1, 0
    %v551 = vcvt.s32.f32 %v550
    %v552 = vlaneseq
    %v553 = vshrl.u32 %v552, 7
    %v554 = vsub.s32 0, %v553
    %v555 = vrot.slane %v551, %v554
    %v556 = vmul.f32 %v542, %v555
    %v557 = vmul.f32 %v546, %v555
    %v558 = vmul.f32 %v543, %v555
    %v559 = vmul.f32 %v547, %v555
    %v560 = vmul.f32 %v544, %v555
    %v561 = vmul.f32 %v548, %v555
    %v562 = vmul.f32 %v545, %v555
    %v563 = vmul.f32 %v549, %v555
    %564 = vset.pattern.permute.xlu0 12
    %565 = vperm.xlu0 %564, %v40
    %v566 = vpop.permute.xlu0 %565
    %568 = vset.pattern.permute.xlu0 12
    %569 = vperm.xlu0 %568, %v41
    %v570 = vpop.permute.xlu0 %569
    %572 = vset.pattern.permute.xlu0 12
    %573 = vperm.xlu0 %572, %v42
    %v574 = vpop.permute.xlu0 %573
    %576 = vset.pattern.permute.xlu0 12
    %577 = vperm.xlu0 %576, %v43
    %v578 = vpop.permute.xlu0 %577
    %v580 = vmul.f32 %v566, %v556
    %v581 = vmul.f32 %v566, %v557
    %v582 = vmul.f32 %v570, %v558
    %v583 = vmul.f32 %v570, %v559
    %v584 = vmul.f32 %v574, %v560
    %v585 = vmul.f32 %v574, %v561
    %v586 = vmul.f32 %v578, %v562
    %v587 = vmul.f32 %v578, %v563
    %v588 = vadd.f32 %v485, %v580
    %v589 = vadd.f32 %v486, %v581
    %v590 = vadd.f32 %v487, %v582
    %v591 = vadd.f32 %v488, %v583
    %v592 = vadd.f32 %v489, %v584
    %v593 = vadd.f32 %v490, %v585
    %v594 = vadd.f32 %v491, %v586
    %v595 = vadd.f32 %v492, %v587
    %596 = vset.pattern.permute.xlu0 17
    %597 = vperm.xlu0 %596, %v40
    %v598 = vpop.permute.xlu0 %597
    %600 = vset.pattern.permute.xlu0 17
    %601 = vperm.xlu0 %600, %v41
    %v602 = vpop.permute.xlu0 %601
    %604 = vset.pattern.permute.xlu0 17
    %605 = vperm.xlu0 %604, %v42
    %v606 = vpop.permute.xlu0 %605
    %608 = vset.pattern.permute.xlu0 17
    %609 = vperm.xlu0 %608, %v43
    %v610 = vpop.permute.xlu0 %609
    %v612 = vmul.f32 %v598, %v556
    %v613 = vmul.f32 %v598, %v557
    %v614 = vmul.f32 %v602, %v558
    %v615 = vmul.f32 %v602, %v559
    %v616 = vmul.f32 %v606, %v560
    %v617 = vmul.f32 %v606, %v561
    %v618 = vmul.f32 %v610, %v562
    %v619 = vmul.f32 %v610, %v563
    %v620 = vadd.f32 %v517, %v612
    %v621 = vadd.f32 %v518, %v613
    %v622 = vadd.f32 %v519, %v614
    %v623 = vadd.f32 %v520, %v615
    %v624 = vadd.f32 %v521, %v616
    %v625 = vadd.f32 %v522, %v617
    %v626 = vadd.f32 %v523, %v618
    %v627 = vadd.f32 %v524, %v619
    %vm628 = vcmp.lt.s32.totalorder %v166, 126
    %629 = vrot.lane.b32.xlu0 %v157, 126
    %v630 = vpop.permute.xlu0 %629
    %631 = vrot.lane.b32.xlu0 %v159, 126
    %v632 = vpop.permute.xlu0 %631
    %633 = vrot.lane.b32.xlu0 %v161, 126
    %v634 = vpop.permute.xlu0 %633
    %635 = vrot.lane.b32.xlu0 %v163, 126
    %v636 = vpop.permute.xlu0 %635
    %637 = vrot.lane.b32.xlu0 %v158, 126
    %v638 = vpop.permute.xlu0 %637
    %639 = vrot.lane.b32.xlu0 %v160, 126
    %v640 = vpop.permute.xlu0 %639
    %641 = vrot.lane.b32.xlu0 %v162, 126
    %v642 = vpop.permute.xlu0 %641
    %643 = vrot.lane.b32.xlu0 %v164, 126
    %v644 = vpop.permute.xlu0 %643
    %v645 = vsel %vm628, %v630, %v638
    %v646 = vsel %vm628, %v632, %v640
    %v647 = vsel %vm628, %v634, %v642
    %v648 = vsel %vm628, %v636, %v644
    %v649 = vsel %vm628, %v638, %v630
    %v650 = vsel %vm628, %v640, %v632
    %v651 = vsel %vm628, %v642, %v634
    %v652 = vsel %vm628, %v644, %v636
    %v653 = vsel %vm628, 1, 0
    %v654 = vcvt.s32.f32 %v653
    %v655 = vlaneseq
    %v656 = vshrl.u32 %v655, 7
    %v657 = vsub.s32 0, %v656
    %v658 = vrot.slane %v654, %v657
    %v659 = vmul.f32 %v645, %v658
    %v660 = vmul.f32 %v649, %v658
    %v661 = vmul.f32 %v646, %v658
    %v662 = vmul.f32 %v650, %v658
    %v663 = vmul.f32 %v647, %v658
    %v664 = vmul.f32 %v651, %v658
    %v665 = vmul.f32 %v648, %v658
    %v666 = vmul.f32 %v652, %v658
    %667 = vset.pattern.permute.xlu0 18
    %668 = vperm.xlu0 %667, %v40
    %v669 = vpop.permute.xlu0 %668
    %671 = vset.pattern.permute.xlu0 18
    %672 = vperm.xlu0 %671, %v41
    %v673 = vpop.permute.xlu0 %672
    %675 = vset.pattern.permute.xlu0 18
    %676 = vperm.xlu0 %675, %v42
    %v677 = vpop.permute.xlu0 %676
    %679 = vset.pattern.permute.xlu0 18
    %680 = vperm.xlu0 %679, %v43
    %v681 = vpop.permute.xlu0 %680
    %v683 = vmul.f32 %v669, %v659
    %v684 = vmul.f32 %v669, %v660
    %v685 = vmul.f32 %v673, %v661
    %v686 = vmul.f32 %v673, %v662
    %v687 = vmul.f32 %v677, %v663
    %v688 = vmul.f32 %v677, %v664
    %v689 = vmul.f32 %v681, %v665
    %v690 = vmul.f32 %v681, %v666
    %v691 = vadd.f32 %v620, %v683
    %v692 = vadd.f32 %v621, %v684
    %v693 = vadd.f32 %v622, %v685
    %v694 = vadd.f32 %v623, %v686
    %v695 = vadd.f32 %v624, %v687
    %v696 = vadd.f32 %v625, %v688
    %v697 = vadd.f32 %v626, %v689
    %v698 = vadd.f32 %v627, %v690
    %vm699 = vcmp.lt.s32.totalorder %v166, 125
    %700 = vrot.lane.b32.xlu0 %v157, 125
    %v701 = vpop.permute.xlu0 %700
    %702 = vrot.lane.b32.xlu0 %v159, 125
    %v703 = vpop.permute.xlu0 %702
    %704 = vrot.lane.b32.xlu0 %v161, 125
    %v705 = vpop.permute.xlu0 %704
    %706 = vrot.lane.b32.xlu0 %v163, 125
    %v707 = vpop.permute.xlu0 %706
    %708 = vrot.lane.b32.xlu0 %v158, 125
    %v709 = vpop.permute.xlu0 %708
    %710 = vrot.lane.b32.xlu0 %v160, 125
    %v711 = vpop.permute.xlu0 %710
    %712 = vrot.lane.b32.xlu0 %v162, 125
    %v713 = vpop.permute.xlu0 %712
    %714 = vrot.lane.b32.xlu0 %v164, 125
    %v715 = vpop.permute.xlu0 %714
    %v716 = vsel %vm699, %v701, %v709
    %v717 = vsel %vm699, %v703, %v711
    %v718 = vsel %vm699, %v705, %v713
    %v719 = vsel %vm699, %v707, %v715
    %v720 = vsel %vm699, %v709, %v701
    %v721 = vsel %vm699, %v711, %v703
    %v722 = vsel %vm699, %v713, %v705
    %v723 = vsel %vm699, %v715, %v707
    %v724 = vsel %vm699, 1, 0
    %v725 = vcvt.s32.f32 %v724
    %v726 = vlaneseq
    %v727 = vshrl.u32 %v726, 7
    %v728 = vsub.s32 0, %v727
    %v729 = vrot.slane %v725, %v728
    %v730 = vmul.f32 %v716, %v729
    %v731 = vmul.f32 %v720, %v729
    %v732 = vmul.f32 %v717, %v729
    %v733 = vmul.f32 %v721, %v729
    %v734 = vmul.f32 %v718, %v729
    %v735 = vmul.f32 %v722, %v729
    %v736 = vmul.f32 %v719, %v729
    %v737 = vmul.f32 %v723, %v729
    %738 = vset.pattern.permute.xlu0 19
    %739 = vperm.xlu0 %738, %v40
    %v740 = vpop.permute.xlu0 %739
    %742 = vset.pattern.permute.xlu0 19
    %743 = vperm.xlu0 %742, %v41
    %v744 = vpop.permute.xlu0 %743
    %746 = vset.pattern.permute.xlu0 19
    %747 = vperm.xlu0 %746, %v42
    %v748 = vpop.permute.xlu0 %747
    %750 = vset.pattern.permute.xlu0 19
    %751 = vperm.xlu0 %750, %v43
    %v752 = vpop.permute.xlu0 %751
    %v754 = vmul.f32 %v740, %v730
    %v755 = vmul.f32 %v740, %v731
    %v756 = vmul.f32 %v744, %v732
    %v757 = vmul.f32 %v744, %v733
    %v758 = vmul.f32 %v748, %v734
    %v759 = vmul.f32 %v748, %v735
    %v760 = vmul.f32 %v752, %v736
    %v761 = vmul.f32 %v752, %v737
    %v762 = vadd.f32 %v691, %v754
    %v763 = vadd.f32 %v692, %v755
    %v764 = vadd.f32 %v693, %v756
    %v765 = vadd.f32 %v694, %v757
    %v766 = vadd.f32 %v695, %v758
    %v767 = vadd.f32 %v696, %v759
    %v768 = vadd.f32 %v697, %v760
    %v769 = vadd.f32 %v698, %v761
    %770 = vset.pattern.permute.xlu0 2
    %771 = vperm.xlu0 %770, %v40
    %v772 = vpop.permute.xlu0 %771
    %774 = vset.pattern.permute.xlu0 2
    %775 = vperm.xlu0 %774, %v41
    %v776 = vpop.permute.xlu0 %775
    %778 = vset.pattern.permute.xlu0 2
    %779 = vperm.xlu0 %778, %v42
    %v780 = vpop.permute.xlu0 %779
    %782 = vset.pattern.permute.xlu0 2
    %783 = vperm.xlu0 %782, %v43
    %v784 = vpop.permute.xlu0 %783
    %v786 = vmul.f32 %v157, %v772
    %v787 = vmul.f32 %v158, %v772
    %v788 = vmul.f32 %v159, %v776
    %v789 = vmul.f32 %v160, %v776
    %v790 = vmul.f32 %v161, %v780
    %v791 = vmul.f32 %v162, %v780
    %v792 = vmul.f32 %v163, %v784
    %v793 = vmul.f32 %v164, %v784
    %794 = vset.pattern.permute.xlu0 3
    %795 = vperm.xlu0 %794, %v40
    %v796 = vpop.permute.xlu0 %795
    %798 = vset.pattern.permute.xlu0 3
    %799 = vperm.xlu0 %798, %v41
    %v800 = vpop.permute.xlu0 %799
    %802 = vset.pattern.permute.xlu0 3
    %803 = vperm.xlu0 %802, %v42
    %v804 = vpop.permute.xlu0 %803
    %806 = vset.pattern.permute.xlu0 3
    %807 = vperm.xlu0 %806, %v43
    %v808 = vpop.permute.xlu0 %807
    %v810 = vadd.f32 %v786, %v796
    %v811 = vadd.f32 %v787, %v796
    %v812 = vadd.f32 %v788, %v800
    %v813 = vadd.f32 %v789, %v800
    %v814 = vadd.f32 %v790, %v804
    %v815 = vadd.f32 %v791, %v804
    %v816 = vadd.f32 %v792, %v808
    %v817 = vadd.f32 %v793, %v808
    %818 = vmatprep.subr.mxu0 %v180
    %819 = vmatpush1.xpose.msra.mxu0 %v179
    %820 = vmatprep.subr.mxu0 0.0
    %821 = vmatpush1.xpose.msra.mxu0 0.0
    %822 = vmatprep.subr.mxu0 0.0
    %823 = vmatpush1.xpose.msra.mxu0 0.0
    %824 = vmatprep.subr.mxu0 0.0
    %825 = vmatpush1.xpose.msra.mxu0 0.0
    %826 = vmatprep.subr.mxu0 0.0
    %827 = vmatpush1.xpose.msra.mxu0 0.0
    %828 = vmatprep.subr.mxu0 0.0
    %829 = vmatpush1.xpose.msra.mxu0 0.0
    %830 = vmatprep.subr.mxu0 0.0
    %831 = vmatpush1.xpose.msra.mxu0 0.0
    %832 = vmatprep.subr.mxu0 0.0
    %833 = vmatpush1.xpose.msra.mxu0 0.0
    %834 = vmatprep.subr.mxu0 0.0
    %835 = vmatpush1.xpose.msra.mxu0 0.0
    %836 = vmatprep.subr.mxu0 0.0
    %837 = vmatpush1.xpose.msra.mxu0 0.0
    %838 = vmatprep.subr.mxu0 0.0
    %839 = vmatpush1.xpose.msra.mxu0 0.0
    %840 = vmatprep.subr.mxu0 0.0
    %841 = vmatpush1.xpose.msra.mxu0 0.0
    %842 = vmatprep.subr.mxu0 0.0
    %843 = vmatpush1.xpose.msra.mxu0 0.0
    %844 = vmatprep.subr.mxu0 0.0
    %845 = vmatpush1.xpose.msra.mxu0 0.0
    %846 = vmatprep.subr.mxu0 0.0
    %847 = vmatpush1.xpose.msra.mxu0 0.0
    %848 = vmatprep.subr.mxu0 0.0
    %849 = vmatpush1.xpose.msra.mxu0 0.0
    %850 = vmatprep.subr.mxu0 0.0
    %851 = vmatpush1.xpose.msra.mxu0 0.0
    %852 = vmatprep.subr.mxu0 0.0
    %853 = vmatpush1.xpose.msra.mxu0 0.0
    %854 = vmatprep.subr.mxu0 0.0
    %855 = vmatpush1.xpose.msra.mxu0 0.0
    %856 = vmatprep.subr.mxu0 0.0
    %857 = vmatpush1.xpose.msra.mxu0 0.0
    %858 = vmatprep.subr.mxu0 0.0
    %859 = vmatpush1.xpose.msra.mxu0 0.0
    %860 = vmatprep.subr.mxu0 0.0
    %861 = vmatpush1.xpose.msra.mxu0 0.0
    %862 = vmatprep.subr.mxu0 0.0
    %863 = vmatpush1.xpose.msra.mxu0 0.0
    %864 = vmatprep.subr.mxu0 0.0
    %865 = vmatpush1.xpose.msra.mxu0 0.0
    %866 = vmatprep.subr.mxu0 0.0
    %867 = vmatpush1.xpose.msra.mxu0 0.0
    %868 = vmatprep.subr.mxu0 0.0
    %869 = vmatpush1.xpose.msra.mxu0 0.0
    %870 = vmatprep.subr.mxu0 0.0
    %871 = vmatpush1.xpose.msra.mxu0 0.0
    %872 = vmatprep.subr.mxu0 0.0
    %873 = vmatpush1.xpose.msra.mxu0 0.0
    %874 = vmatprep.subr.mxu0 0.0
    %875 = vmatpush1.xpose.msra.mxu0 0.0
    %876 = vmatprep.subr.mxu0 0.0
    %877 = vmatpush1.xpose.msra.mxu0 0.0
    %878 = vmatprep.subr.mxu0 0.0
    %879 = vmatpush1.xpose.msra.mxu0 0.0
    %880 = vmatprep.subr.mxu0 0.0
    %881 = vmatpush1.xpose.msra.mxu0 0.0
    %882 = vmatprep.mubr.f32.mxu0 %v158
    %883 = vmatmul.mubr.f32.gmra.mrb[0].mxu0 %v157
    %v884 = vpop.f32.mrb[0].mxu0
    %v885 = vadd.f32 0.0, %v884
    %v886 = vpop.f32.mrb[0].mxu0
    %887 = vmatprep.mubr.f32.mxu0 %v160
    %888 = vmatmul.mubr.f32.gmra.mrb[0].mxu0 %v159
    %v889 = vpop.f32.mrb[0].mxu0
    %v890 = vadd.f32 0.0, %v889
    %v891 = vpop.f32.mrb[0].mxu0
    %892 = vmatprep.mubr.f32.mxu0 %v162
    %893 = vmatmul.mubr.f32.gmra.mrb[0].mxu0 %v161
    %v894 = vpop.f32.mrb[0].mxu0
    %v895 = vadd.f32 0.0, %v894
    %v896 = vpop.f32.mrb[0].mxu0
    %897 = vmatprep.mubr.f32.mxu0 %v164
    %898 = vmatmul.mubr.f32.gmra.mrb[0].mxu0 %v163
    %v899 = vpop.f32.mrb[0].mxu0
    %v900 = vadd.f32 0.0, %v899
    %v901 = vpop.f32.mrb[0].mxu0
    %902 = vdwg.mxu0
    %v903 = vmul.f32 %v885, 0.0078125
    %v904 = vmul.f32 %v890, 0.0078125
    %v905 = vmul.f32 %v895, 0.0078125
    %v906 = vmul.f32 %v900, 0.0078125
    %907 = vset.pattern.permute.xlu0 4
    %908 = vperm.xlu0 %907, %v40
    %v909 = vpop.permute.xlu0 %908
    %911 = vset.pattern.permute.xlu0 4
    %912 = vperm.xlu0 %911, %v41
    %v913 = vpop.permute.xlu0 %912
    %915 = vset.pattern.permute.xlu0 4
    %916 = vperm.xlu0 %915, %v42
    %v917 = vpop.permute.xlu0 %916
    %919 = vset.pattern.permute.xlu0 4
    %920 = vperm.xlu0 %919, %v43
    %v921 = vpop.permute.xlu0 %920
    %v923 = vmul.f32 %v903, %v909
    %v924 = vmul.f32 %v904, %v913
    %v925 = vmul.f32 %v905, %v917
    %v926 = vmul.f32 %v906, %v921
    %927 = vset.pattern.permute.xlu0 5
    %928 = vperm.xlu0 %927, %v40
    %v929 = vpop.permute.xlu0 %928
    %931 = vset.pattern.permute.xlu0 5
    %932 = vperm.xlu0 %931, %v41
    %v933 = vpop.permute.xlu0 %932
    %935 = vset.pattern.permute.xlu0 5
    %936 = vperm.xlu0 %935, %v42
    %v937 = vpop.permute.xlu0 %936
    %939 = vset.pattern.permute.xlu0 5
    %940 = vperm.xlu0 %939, %v43
    %v941 = vpop.permute.xlu0 %940
    %v943 = vadd.f32 %v923, %v929
    %v944 = vadd.f32 %v924, %v933
    %v945 = vadd.f32 %v925, %v937
    %v946 = vadd.f32 %v926, %v941
    %v947 = vmax.f32 %v943, 0.0
    %v948 = vmax.f32 %v944, 0.0
    %v949 = vmax.f32 %v945, 0.0
    %v950 = vmax.f32 %v946, 0.0
    %vm951 = vcmask 15360
    %v953 = vsel %vm951, %v947, 0
    %v956 = vsel %vm951, %v948, 0
    %v959 = vsel %vm951, %v949, 0
    %v962 = vsel %vm951, %v950, 0
    %vm964 = vcmask 1041408
    %v966 = vsel %vm964, %v179, 0
    %v969 = vsel %vm964, %v180, 0
    %971 = vmatprep.subr.mxu0 %v969
    %972 = vmatpush1.msra.mxu0 %v966
    %973 = vmatprep.subr.mxu0 0.0
    %974 = vmatpush1.msra.mxu0 0.0
    %975 = vmatprep.subr.mxu0 0.0
    %976 = vmatpush1.msra.mxu0 0.0
    %977 = vmatprep.subr.mxu0 0.0
    %978 = vmatpush1.msra.mxu0 0.0
    %979 = vmatprep.subr.mxu0 0.0
    %980 = vmatpush1.msra.mxu0 0.0
    %981 = vmatprep.subr.mxu0 0.0
    %982 = vmatpush1.msra.mxu0 0.0
    %983 = vmatprep.subr.mxu0 0.0
    %984 = vmatpush1.msra.mxu0 0.0
    %985 = vmatprep.subr.mxu0 0.0
    %986 = vmatpush1.msra.mxu0 0.0
    %987 = vmatprep.subr.mxu0 0.0
    %988 = vmatpush1.msra.mxu0 0.0
    %989 = vmatprep.subr.mxu0 0.0
    %990 = vmatpush1.msra.mxu0 0.0
    %991 = vmatprep.subr.mxu0 0.0
    %992 = vmatpush1.msra.mxu0 0.0
    %993 = vmatprep.subr.mxu0 0.0
    %994 = vmatpush1.msra.mxu0 0.0
    %995 = vmatprep.subr.mxu0 0.0
    %996 = vmatpush1.msra.mxu0 0.0
    %997 = vmatprep.subr.mxu0 0.0
    %998 = vmatpush1.msra.mxu0 0.0
    %999 = vmatprep.subr.mxu0 0.0
    %1000 = vmatpush1.msra.mxu0 0.0
    %1001 = vmatprep.subr.mxu0 0.0
    %1002 = vmatpush1.msra.mxu0 0.0
    %1003 = vmatprep.subr.mxu0 0.0
    %1004 = vmatpush1.msra.mxu0 0.0
    %1005 = vmatprep.subr.mxu0 0.0
    %1006 = vmatpush1.msra.mxu0 0.0
    %1007 = vmatprep.subr.mxu0 0.0
    %1008 = vmatpush1.msra.mxu0 0.0
    %1009 = vmatprep.subr.mxu0 0.0
    %1010 = vmatpush1.msra.mxu0 0.0
    %1011 = vmatprep.subr.mxu0 0.0
    %1012 = vmatpush1.msra.mxu0 0.0
    %1013 = vmatprep.subr.mxu0 0.0
    %1014 = vmatpush1.msra.mxu0 0.0
    %1015 = vmatprep.subr.mxu0 0.0
    %1016 = vmatpush1.msra.mxu0 0.0
    %1017 = vmatprep.subr.mxu0 0.0
    %1018 = vmatpush1.msra.mxu0 0.0
    %1019 = vmatprep.subr.mxu0 0.0
    %1020 = vmatpush1.msra.mxu0 0.0
    %1021 = vmatprep.subr.mxu0 0.0
    %1022 = vmatpush1.msra.mxu0 0.0
    %1023 = vmatprep.subr.mxu0 0.0
    %1024 = vmatpush1.msra.mxu0 0.0
    %1025 = vmatprep.subr.mxu0 0.0
    %1026 = vmatpush1.msra.mxu0 0.0
    %1027 = vmatprep.subr.mxu0 0.0
    %1028 = vmatpush1.msra.mxu0 0.0
    %1029 = vmatprep.subr.mxu0 0.0
    %1030 = vmatpush1.msra.mxu0 0.0
    %1031 = vmatprep.subr.mxu0 0.0
    %1032 = vmatpush1.msra.mxu0 0.0
    %1033 = vmatprep.subr.mxu0 0.0
    %1034 = vmatpush1.msra.mxu0 0.0
    %1035 = vmatprep.mubr.f32.mxu0 0.0
    %1036 = vmatmul.mubr.f32.gmra.mrb[0].mxu0 %v953
    %v1037 = vpop.f32.mrb[0].mxu0
    %v1038 = vadd.f32 0.0, %v1037
    %v1039 = vpop.f32.mrb[0].mxu0
    %v1040 = vadd.f32 0.0, %v1039
    %1041 = vmatprep.mubr.f32.mxu0 0.0
    %1042 = vmatmul.mubr.f32.gmra.mrb[0].mxu0 %v956
    %v1043 = vpop.f32.mrb[0].mxu0
    %v1044 = vadd.f32 0.0, %v1043
    %v1045 = vpop.f32.mrb[0].mxu0
    %v1046 = vadd.f32 0.0, %v1045
    %1047 = vmatprep.mubr.f32.mxu0 0.0
    %1048 = vmatmul.mubr.f32.gmra.mrb[0].mxu0 %v959
    %v1049 = vpop.f32.mrb[0].mxu0
    %v1050 = vadd.f32 0.0, %v1049
    %v1051 = vpop.f32.mrb[0].mxu0
    %v1052 = vadd.f32 0.0, %v1051
    %1053 = vmatprep.mubr.f32.mxu0 0.0
    %1054 = vmatmul.mubr.f32.gmra.mrb[0].mxu0 %v962
    %v1055 = vpop.f32.mrb[0].mxu0
    %v1056 = vadd.f32 0.0, %v1055
    %v1057 = vpop.f32.mrb[0].mxu0
    %v1058 = vadd.f32 0.0, %v1057
    %1059 = vdwg.mxu0
    %v1060 = vmul.f32 %v810, %v1038
    %v1061 = vmul.f32 %v811, %v1040
    %v1062 = vmul.f32 %v812, %v1044
    %v1063 = vmul.f32 %v813, %v1046
    %v1064 = vmul.f32 %v814, %v1050
    %v1065 = vmul.f32 %v815, %v1052
    %v1066 = vmul.f32 %v816, %v1056
    %v1067 = vmul.f32 %v817, %v1058
    %v1068 = vmul.f32 %v762, %v588
    %v1069 = vmul.f32 %v763, %v589
    %v1070 = vmul.f32 %v764, %v590
    %v1071 = vmul.f32 %v765, %v591
    %v1072 = vmul.f32 %v766, %v592
    %v1073 = vmul.f32 %v767, %v593
    %v1074 = vmul.f32 %v768, %v594
    %v1075 = vmul.f32 %v769, %v595
    %v1076 = vadd.f32 %v1060, %v1068
    %v1077 = vadd.f32 %v1061, %v1069
    %v1078 = vadd.f32 %v1062, %v1070
    %v1079 = vadd.f32 %v1063, %v1071
    %v1080 = vadd.f32 %v1064, %v1072
    %v1081 = vadd.f32 %v1065, %v1073
    %v1082 = vadd.f32 %v1066, %v1074
    %v1083 = vadd.f32 %v1067, %v1075
    %v1084 = vadd.f32 %v1076, %v157
    %v1085 = vadd.f32 %v1077, %v158
    %v1086 = vadd.f32 %v1078, %v159
    %v1087 = vadd.f32 %v1079, %v160
    %v1088 = vadd.f32 %v1080, %v161
    %v1089 = vadd.f32 %v1081, %v162
    %v1090 = vadd.f32 %v1082, %v163
    %v1091 = vadd.f32 %v1083, %v164
    %v1093 = vlaneseq
    %v1094 = vshrl.u32 %v1093, 7
    %v1095 = vsub.s32 0, %v1094
    %v1096 = vrot.slane %v39, %v1095
    %v1097 = vlaneseq
    %v1098 = vshrl.u32 %v1097, 7
    %v1099 = vsub.s32 1, %v1098
    %v1100 = vrot.slane %v39, %v1099
    %v1103 = vmul.f32 %v31, %v1096
    %v1104 = vmul.f32 %v32, %v1100
    %v1105 = vmul.f32 %v33, %v1096
    %v1106 = vmul.f32 %v34, %v1100
    %v1107 = vmul.f32 %v35, %v1096
    %v1108 = vmul.f32 %v36, %v1100
    %v1109 = vmul.f32 %v37, %v1096
    %v1110 = vmul.f32 %v38, %v1100
    %v1111 = vadd.f32 %v1103, %v1084
    %v1112 = vadd.f32 %v1104, %v1085
    %v1113 = vadd.f32 %v1105, %v1086
    %v1114 = vadd.f32 %v1106, %v1087
    %v1115 = vadd.f32 %v1107, %v1088
    %v1116 = vadd.f32 %v1108, %v1089
    %v1117 = vadd.f32 %v1109, %v1090
    %v1118 = vadd.f32 %v1110, %v1091
    %1119 = vmatprep.subr.mxu0 %v180
    %1120 = vmatpush1.xpose.msra.mxu0 %v179
    %1121 = vmatprep.subr.mxu0 0.0
    %1122 = vmatpush1.xpose.msra.mxu0 0.0
    %1123 = vmatprep.subr.mxu0 0.0
    %1124 = vmatpush1.xpose.msra.mxu0 0.0
    %1125 = vmatprep.subr.mxu0 0.0
    %1126 = vmatpush1.xpose.msra.mxu0 0.0
    %1127 = vmatprep.subr.mxu0 0.0
    %1128 = vmatpush1.xpose.msra.mxu0 0.0
    %1129 = vmatprep.subr.mxu0 0.0
    %1130 = vmatpush1.xpose.msra.mxu0 0.0
    %1131 = vmatprep.subr.mxu0 0.0
    %1132 = vmatpush1.xpose.msra.mxu0 0.0
    %1133 = vmatprep.subr.mxu0 0.0
    %1134 = vmatpush1.xpose.msra.mxu0 0.0
    %1135 = vmatprep.subr.mxu0 0.0
    %1136 = vmatpush1.xpose.msra.mxu0 0.0
    %1137 = vmatprep.subr.mxu0 0.0
    %1138 = vmatpush1.xpose.msra.mxu0 0.0
    %1139 = vmatprep.subr.mxu0 0.0
    %1140 = vmatpush1.xpose.msra.mxu0 0.0
    %1141 = vmatprep.subr.mxu0 0.0
    %1142 = vmatpush1.xpose.msra.mxu0 0.0
    %1143 = vmatprep.subr.mxu0 0.0
    %1144 = vmatpush1.xpose.msra.mxu0 0.0
    %1145 = vmatprep.subr.mxu0 0.0
    %1146 = vmatpush1.xpose.msra.mxu0 0.0
    %1147 = vmatprep.subr.mxu0 0.0
    %1148 = vmatpush1.xpose.msra.mxu0 0.0
    %1149 = vmatprep.subr.mxu0 0.0
    %1150 = vmatpush1.xpose.msra.mxu0 0.0
    %1151 = vmatprep.subr.mxu0 0.0
    %1152 = vmatpush1.xpose.msra.mxu0 0.0
    %1153 = vmatprep.subr.mxu0 0.0
    %1154 = vmatpush1.xpose.msra.mxu0 0.0
    %1155 = vmatprep.subr.mxu0 0.0
    %1156 = vmatpush1.xpose.msra.mxu0 0.0
    %1157 = vmatprep.subr.mxu0 0.0
    %1158 = vmatpush1.xpose.msra.mxu0 0.0
    %1159 = vmatprep.subr.mxu0 0.0
    %1160 = vmatpush1.xpose.msra.mxu0 0.0
    %1161 = vmatprep.subr.mxu0 0.0
    %1162 = vmatpush1.xpose.msra.mxu0 0.0
    %1163 = vmatprep.subr.mxu0 0.0
    %1164 = vmatpush1.xpose.msra.mxu0 0.0
    %1165 = vmatprep.subr.mxu0 0.0
    %1166 = vmatpush1.xpose.msra.mxu0 0.0
    %1167 = vmatprep.subr.mxu0 0.0
    %1168 = vmatpush1.xpose.msra.mxu0 0.0
    %1169 = vmatprep.subr.mxu0 0.0
    %1170 = vmatpush1.xpose.msra.mxu0 0.0
    %1171 = vmatprep.subr.mxu0 0.0
    %1172 = vmatpush1.xpose.msra.mxu0 0.0
    %1173 = vmatprep.subr.mxu0 0.0
    %1174 = vmatpush1.xpose.msra.mxu0 0.0
    %1175 = vmatprep.subr.mxu0 0.0
    %1176 = vmatpush1.xpose.msra.mxu0 0.0
    %1177 = vmatprep.subr.mxu0 0.0
    %1178 = vmatpush1.xpose.msra.mxu0 0.0
    %1179 = vmatprep.subr.mxu0 0.0
    %1180 = vmatpush1.xpose.msra.mxu0 0.0
    %1181 = vmatprep.subr.mxu0 0.0
    %1182 = vmatpush1.xpose.msra.mxu0 0.0
    %1183 = vmatprep.mubr.f32.mxu0 %v1112
    %1184 = vmatmul.mubr.f32.gmra.mrb[0].mxu0 %v1111
    %v1185 = vpop.f32.mrb[0].mxu0
    %v1186 = vadd.f32 0.0, %v1185
    %v1187 = vpop.f32.mrb[0].mxu0
    %1188 = vmatprep.mubr.f32.mxu0 %v1114
    %1189 = vmatmul.mubr.f32.gmra.mrb[0].mxu0 %v1113
    %v1190 = vpop.f32.mrb[0].mxu0
    %v1191 = vadd.f32 0.0, %v1190
    %v1192 = vpop.f32.mrb[0].mxu0
    %1193 = vmatprep.mubr.f32.mxu0 %v1116
    %1194 = vmatmul.mubr.f32.gmra.mrb[0].mxu0 %v1115
    %v1195 = vpop.f32.mrb[0].mxu0
    %v1196 = vadd.f32 0.0, %v1195
    %v1197 = vpop.f32.mrb[0].mxu0
    %1198 = vmatprep.mubr.f32.mxu0 %v1118
    %1199 = vmatmul.mubr.f32.gmra.mrb[0].mxu0 %v1117
    %v1200 = vpop.f32.mrb[0].mxu0
    %v1201 = vadd.f32 0.0, %v1200
    %v1202 = vpop.f32.mrb[0].mxu0
    %1203 = vdwg.mxu0
    %v1204 = vmul.f32 %v1111, %v1111
    %v1205 = vmul.f32 %v1112, %v1112
    %v1206 = vmul.f32 %v1113, %v1113
    %v1207 = vmul.f32 %v1114, %v1114
    %v1208 = vmul.f32 %v1115, %v1115
    %v1209 = vmul.f32 %v1116, %v1116
    %v1210 = vmul.f32 %v1117, %v1117
    %v1211 = vmul.f32 %v1118, %v1118
    %1212 = vmatprep.subr.mxu0 %v180
    %1213 = vmatpush1.xpose.msra.mxu0 %v179
    %1214 = vmatprep.subr.mxu0 0.0
    %1215 = vmatpush1.xpose.msra.mxu0 0.0
    %1216 = vmatprep.subr.mxu0 0.0
    %1217 = vmatpush1.xpose.msra.mxu0 0.0
    %1218 = vmatprep.subr.mxu0 0.0
    %1219 = vmatpush1.xpose.msra.mxu0 0.0
    %1220 = vmatprep.subr.mxu0 0.0
    %1221 = vmatpush1.xpose.msra.mxu0 0.0
    %1222 = vmatprep.subr.mxu0 0.0
    %1223 = vmatpush1.xpose.msra.mxu0 0.0
    %1224 = vmatprep.subr.mxu0 0.0
    %1225 = vmatpush1.xpose.msra.mxu0 0.0
    %1226 = vmatprep.subr.mxu0 0.0
    %1227 = vmatpush1.xpose.msra.mxu0 0.0
    %1228 = vmatprep.subr.mxu0 0.0
    %1229 = vmatpush1.xpose.msra.mxu0 0.0
    %1230 = vmatprep.subr.mxu0 0.0
    %1231 = vmatpush1.xpose.msra.mxu0 0.0
    %1232 = vmatprep.subr.mxu0 0.0
    %1233 = vmatpush1.xpose.msra.mxu0 0.0
    %1234 = vmatprep.subr.mxu0 0.0
    %1235 = vmatpush1.xpose.msra.mxu0 0.0
    %1236 = vmatprep.subr.mxu0 0.0
    %1237 = vmatpush1.xpose.msra.mxu0 0.0
    %1238 = vmatprep.subr.mxu0 0.0
    %1239 = vmatpush1.xpose.msra.mxu0 0.0
    %1240 = vmatprep.subr.mxu0 0.0
    %1241 = vmatpush1.xpose.msra.mxu0 0.0
    %1242 = vmatprep.subr.mxu0 0.0
    %1243 = vmatpush1.xpose.msra.mxu0 0.0
    %1244 = vmatprep.subr.mxu0 0.0
    %1245 = vmatpush1.xpose.msra.mxu0 0.0
    %1246 = vmatprep.subr.mxu0 0.0
    %1247 = vmatpush1.xpose.msra.mxu0 0.0
    %1248 = vmatprep.subr.mxu0 0.0
    %1249 = vmatpush1.xpose.msra.mxu0 0.0
    %1250 = vmatprep.subr.mxu0 0.0
    %1251 = vmatpush1.xpose.msra.mxu0 0.0
    %1252 = vmatprep.subr.mxu0 0.0
    %1253 = vmatpush1.xpose.msra.mxu0 0.0
    %1254 = vmatprep.subr.mxu0 0.0
    %1255 = vmatpush1.xpose.msra.mxu0 0.0
    %1256 = vmatprep.subr.mxu0 0.0
    %1257 = vmatpush1.xpose.msra.mxu0 0.0
    %1258 = vmatprep.subr.mxu0 0.0
    %1259 = vmatpush1.xpose.msra.mxu0 0.0
    %1260 = vmatprep.subr.mxu0 0.0
    %1261 = vmatpush1.xpose.msra.mxu0 0.0
    %1262 = vmatprep.subr.mxu0 0.0
    %1263 = vmatpush1.xpose.msra.mxu0 0.0
    %1264 = vmatprep.subr.mxu0 0.0
    %1265 = vmatpush1.xpose.msra.mxu0 0.0
    %1266 = vmatprep.subr.mxu0 0.0
    %1267 = vmatpush1.xpose.msra.mxu0 0.0
    %1268 = vmatprep.subr.mxu0 0.0
    %1269 = vmatpush1.xpose.msra.mxu0 0.0
    %1270 = vmatprep.subr.mxu0 0.0
    %1271 = vmatpush1.xpose.msra.mxu0 0.0
    %1272 = vmatprep.subr.mxu0 0.0
    %1273 = vmatpush1.xpose.msra.mxu0 0.0
    %1274 = vmatprep.subr.mxu0 0.0
    %1275 = vmatpush1.xpose.msra.mxu0 0.0
    %1276 = vmatprep.mubr.f32.mxu0 %v1205
    %1277 = vmatmul.mubr.f32.gmra.mrb[0].mxu0 %v1204
    %v1278 = vpop.f32.mrb[0].mxu0
    %v1279 = vadd.f32 0.0, %v1278
    %v1280 = vpop.f32.mrb[0].mxu0
    %1281 = vmatprep.mubr.f32.mxu0 %v1207
    %1282 = vmatmul.mubr.f32.gmra.mrb[0].mxu0 %v1206
    %v1283 = vpop.f32.mrb[0].mxu0
    %v1284 = vadd.f32 0.0, %v1283
    %v1285 = vpop.f32.mrb[0].mxu0
    %1286 = vmatprep.mubr.f32.mxu0 %v1209
    %1287 = vmatmul.mubr.f32.gmra.mrb[0].mxu0 %v1208
    %v1288 = vpop.f32.mrb[0].mxu0
    %v1289 = vadd.f32 0.0, %v1288
    %v1290 = vpop.f32.mrb[0].mxu0
    %1291 = vmatprep.mubr.f32.mxu0 %v1211
    %1292 = vmatmul.mubr.f32.gmra.mrb[0].mxu0 %v1210
    %v1293 = vpop.f32.mrb[0].mxu0
    %v1294 = vadd.f32 0.0, %v1293
    %v1295 = vpop.f32.mrb[0].mxu0
    %1296 = vdwg.mxu0
    %v1297 = vld [vmem:[%s3] sm:$0xff]
    %v1298 = vld [vmem:[%s3 + $0x8] sm:$0xff]
    %v1299 = vld [vmem:[%s3 + $0x10] sm:$0xff]
    %v1300 = vld [vmem:[%s3 + $0x18] sm:$0xff]
    %1305 = vrot.lane.b32.xlu0 %v1279, 2
    %v1306 = vpop.permute.xlu0 %1305
    %1307 = vrot.lane.b32.xlu0 %v1284, 2
    %v1308 = vpop.permute.xlu0 %1307
    %1309 = vrot.lane.b32.xlu0 %v1289, 2
    %v1310 = vpop.permute.xlu0 %1309
    %1311 = vrot.lane.b32.xlu0 %v1294, 2
    %v1312 = vpop.permute.xlu0 %1311
    %v1317 = vsel %vm951, %v1186, %v1306
    %v1318 = vsel %vm951, %v1191, %v1308
    %v1319 = vsel %vm951, %v1196, %v1310
    %v1320 = vsel %vm951, %v1201, %v1312
    %vm1321 = vcmask 261120
    %v1323 = vsel %vm1321, %v1297, 0
    %v1326 = vsel %vm1321, %v1298, 0
    %v1329 = vsel %vm1321, %v1299, 0
    %v1332 = vsel %vm1321, %v1300, 0
    %1334 = vmatprep.subr.mxu0 0.0
    %1335 = vmatpush1.msra.mxu0 %v1317
    %1336 = vmatprep.subr.mxu0 0.0
    %1337 = vmatpush1.msra.mxu0 %v1318
    %1338 = vmatprep.subr.mxu0 0.0
    %1339 = vmatpush1.msra.mxu0 %v1319
    %1340 = vmatprep.subr.mxu0 0.0
    %1341 = vmatpush1.msra.mxu0 %v1320
    %1342 = vmatprep.subr.mxu0 0.0
    %1343 = vmatpush1.msra.mxu0 0.0
    %1344 = vmatprep.subr.mxu0 0.0
    %1345 = vmatpush1.msra.mxu0 0.0
    %1346 = vmatprep.subr.mxu0 0.0
    %1347 = vmatpush1.msra.mxu0 0.0
    %1348 = vmatprep.subr.mxu0 0.0
    %1349 = vmatpush1.msra.mxu0 0.0
    %1350 = vmatprep.subr.mxu0 0.0
    %1351 = vmatpush1.msra.mxu0 0.0
    %1352 = vmatprep.subr.mxu0 0.0
    %1353 = vmatpush1.msra.mxu0 0.0
    %1354 = vmatprep.subr.mxu0 0.0
    %1355 = vmatpush1.msra.mxu0 0.0
    %1356 = vmatprep.subr.mxu0 0.0
    %1357 = vmatpush1.msra.mxu0 0.0
    %1358 = vmatprep.subr.mxu0 0.0
    %1359 = vmatpush1.msra.mxu0 0.0
    %1360 = vmatprep.subr.mxu0 0.0
    %1361 = vmatpush1.msra.mxu0 0.0
    %1362 = vmatprep.subr.mxu0 0.0
    %1363 = vmatpush1.msra.mxu0 0.0
    %1364 = vmatprep.subr.mxu0 0.0
    %1365 = vmatpush1.msra.mxu0 0.0
    %1366 = vmatprep.subr.mxu0 0.0
    %1367 = vmatpush1.msra.mxu0 0.0
    %1368 = vmatprep.subr.mxu0 0.0
    %1369 = vmatpush1.msra.mxu0 0.0
    %1370 = vmatprep.subr.mxu0 0.0
    %1371 = vmatpush1.msra.mxu0 0.0
    %1372 = vmatprep.subr.mxu0 0.0
    %1373 = vmatpush1.msra.mxu0 0.0
    %1374 = vmatprep.subr.mxu0 0.0
    %1375 = vmatpush1.msra.mxu0 0.0
    %1376 = vmatprep.subr.mxu0 0.0
    %1377 = vmatpush1.msra.mxu0 0.0
    %1378 = vmatprep.subr.mxu0 0.0
    %1379 = vmatpush1.msra.mxu0 0.0
    %1380 = vmatprep.subr.mxu0 0.0
    %1381 = vmatpush1.msra.mxu0 0.0
    %1382 = vmatprep.subr.mxu0 0.0
    %1383 = vmatpush1.msra.mxu0 0.0
    %1384 = vmatprep.subr.mxu0 0.0
    %1385 = vmatpush1.msra.mxu0 0.0
    %1386 = vmatprep.subr.mxu0 0.0
    %1387 = vmatpush1.msra.mxu0 0.0
    %1388 = vmatprep.subr.mxu0 0.0
    %1389 = vmatpush1.msra.mxu0 0.0
    %1390 = vmatprep.subr.mxu0 0.0
    %1391 = vmatpush1.msra.mxu0 0.0
    %1392 = vmatprep.subr.mxu0 0.0
    %1393 = vmatpush1.msra.mxu0 0.0
    %1394 = vmatprep.subr.mxu0 0.0
    %1395 = vmatpush1.msra.mxu0 0.0
    %1396 = vmatprep.subr.mxu0 0.0
    %1397 = vmatpush1.msra.mxu0 0.0
    %1398 = vmatprep.mubr.f32.mxu0 0.0
    %1399 = vmatmul.mubr.f32.gmra.mrb[0].mxu0 %v1323
    %v1400 = vpop.f32.mrb[0].mxu0
    %v1401 = vadd.f32 0.0, %v1400
    %v1402 = vpop.f32.mrb[0].mxu0
    %1403 = vmatprep.mubr.f32.mxu0 0.0
    %1404 = vmatmul.mubr.f32.gmra.mrb[0].mxu0 %v1326
    %v1405 = vpop.f32.mrb[0].mxu0
    %v1406 = vadd.f32 0.0, %v1405
    %v1407 = vpop.f32.mrb[0].mxu0
    %1408 = vmatprep.mubr.f32.mxu0 0.0
    %1409 = vmatmul.mubr.f32.gmra.mrb[0].mxu0 %v1329
    %v1410 = vpop.f32.mrb[0].mxu0
    %v1411 = vadd.f32 0.0, %v1410
    %v1412 = vpop.f32.mrb[0].mxu0
    %1413 = vmatprep.mubr.f32.mxu0 0.0
    %1414 = vmatmul.mubr.f32.gmra.mrb[0].mxu0 %v1332
    %v1415 = vpop.f32.mrb[0].mxu0
    %v1416 = vadd.f32 0.0, %v1415
    %v1417 = vpop.f32.mrb[0].mxu0
    %1418 = vdwg.mxu0
    %v1419 = vmul.f32 %v1401, %v1401
    %v1420 = vmul.f32 %v1406, %v1406
    %v1421 = vmul.f32 %v1411, %v1411
    %v1422 = vmul.f32 %v1416, %v1416
    %1427 = vrot.lane.b32.xlu0 %v1419, 2
    %v1428 = vpop.permute.xlu0 %1427
    %1429 = vrot.lane.b32.xlu0 %v1420, 2
    %v1430 = vpop.permute.xlu0 %1429
    %1431 = vrot.lane.b32.xlu0 %v1421, 2
    %v1432 = vpop.permute.xlu0 %1431
    %1433 = vrot.lane.b32.xlu0 %v1422, 2
    %v1434 = vpop.permute.xlu0 %1433
    %v1439 = vsub.f32 %v1401, %v1428
    %v1440 = vsub.f32 %v1406, %v1430
    %v1441 = vsub.f32 %v1411, %v1432
    %v1442 = vsub.f32 %v1416, %v1434
    %v1443 = vadd.f32 %v1439, 1e-05
    %v1444 = vadd.f32 %v1440, 1e-05
    %v1445 = vadd.f32 %v1441, 1e-05
    %v1446 = vadd.f32 %v1442, 1e-05
    %v1447 = vrsqrt.pop %v1443
    %v1448 = vrsqrt.pop %v1444
    %v1449 = vrsqrt.pop %v1445
    %v1450 = vrsqrt.pop %v1446
    %v1452 = vsel %vm951, %v1401, 0
    %v1455 = vsel %vm951, %v1406, 0
    %v1458 = vsel %vm951, %v1411, 0
    %v1461 = vsel %vm951, %v1416, 0
    %1463 = vmatprep.subr.mxu0 %v969
    %1464 = vmatpush1.msra.mxu0 %v966
    %1465 = vmatprep.subr.mxu0 0.0
    %1466 = vmatpush1.msra.mxu0 0.0
    %1467 = vmatprep.subr.mxu0 0.0
    %1468 = vmatpush1.msra.mxu0 0.0
    %1469 = vmatprep.subr.mxu0 0.0
    %1470 = vmatpush1.msra.mxu0 0.0
    %1471 = vmatprep.subr.mxu0 0.0
    %1472 = vmatpush1.msra.mxu0 0.0
    %1473 = vmatprep.subr.mxu0 0.0
    %1474 = vmatpush1.msra.mxu0 0.0
    %1475 = vmatprep.subr.mxu0 0.0
    %1476 = vmatpush1.msra.mxu0 0.0
    %1477 = vmatprep.subr.mxu0 0.0
    %1478 = vmatpush1.msra.mxu0 0.0
    %1479 = vmatprep.subr.mxu0 0.0
    %1480 = vmatpush1.msra.mxu0 0.0
    %1481 = vmatprep.subr.mxu0 0.0
    %1482 = vmatpush1.msra.mxu0 0.0
    %1483 = vmatprep.subr.mxu0 0.0
    %1484 = vmatpush1.msra.mxu0 0.0
    %1485 = vmatprep.subr.mxu0 0.0
    %1486 = vmatpush1.msra.mxu0 0.0
    %1487 = vmatprep.subr.mxu0 0.0
    %1488 = vmatpush1.msra.mxu0 0.0
    %1489 = vmatprep.subr.mxu0 0.0
    %1490 = vmatpush1.msra.mxu0 0.0
    %1491 = vmatprep.subr.mxu0 0.0
    %1492 = vmatpush1.msra.mxu0 0.0
    %1493 = vmatprep.subr.mxu0 0.0
    %1494 = vmatpush1.msra.mxu0 0.0
    %1495 = vmatprep.subr.mxu0 0.0
    %1496 = vmatpush1.msra.mxu0 0.0
    %1497 = vmatprep.subr.mxu0 0.0
    %1498 = vmatpush1.msra.mxu0 0.0
    %1499 = vmatprep.subr.mxu0 0.0
    %1500 = vmatpush1.msra.mxu0 0.0
    %1501 = vmatprep.subr.mxu0 0.0
    %1502 = vmatpush1.msra.mxu0 0.0
    %1503 = vmatprep.subr.mxu0 0.0
    %1504 = vmatpush1.msra.mxu0 0.0
    %1505 = vmatprep.subr.mxu0 0.0
    %1506 = vmatpush1.msra.mxu0 0.0
    %1507 = vmatprep.subr.mxu0 0.0
    %1508 = vmatpush1.msra.mxu0 0.0
    %1509 = vmatprep.subr.mxu0 0.0
    %1510 = vmatpush1.msra.mxu0 0.0
    %1511 = vmatprep.subr.mxu0 0.0
    %1512 = vmatpush1.msra.mxu0 0.0
    %1513 = vmatprep.subr.mxu0 0.0
    %1514 = vmatpush1.msra.mxu0 0.0
    %1515 = vmatprep.subr.mxu0 0.0
    %1516 = vmatpush1.msra.mxu0 0.0
    %1517 = vmatprep.subr.mxu0 0.0
    %1518 = vmatpush1.msra.mxu0 0.0
    %1519 = vmatprep.subr.mxu0 0.0
    %1520 = vmatpush1.msra.mxu0 0.0
    %1521 = vmatprep.subr.mxu0 0.0
    %1522 = vmatpush1.msra.mxu0 0.0
    %1523 = vmatprep.subr.mxu0 0.0
    %1524 = vmatpush1.msra.mxu0 0.0
    %1525 = vmatprep.subr.mxu0 0.0
    %1526 = vmatpush1.msra.mxu0 0.0
    %1527 = vmatprep.mubr.f32.mxu0 0.0
    %1528 = vmatmul.mubr.f32.gmra.mrb[0].mxu0 %v1452
    %v1529 = vpop.f32.mrb[0].mxu0
    %v1530 = vadd.f32 0.0, %v1529
    %v1531 = vpop.f32.mrb[0].mxu0
    %v1532 = vadd.f32 0.0, %v1531
    %1533 = vmatprep.mubr.f32.mxu0 0.0
    %1534 = vmatmul.mubr.f32.gmra.mrb[0].mxu0 %v1455
    %v1535 = vpop.f32.mrb[0].mxu0
    %v1536 = vadd.f32 0.0, %v1535
    %v1537 = vpop.f32.mrb[0].mxu0
    %v1538 = vadd.f32 0.0, %v1537
    %1539 = vmatprep.mubr.f32.mxu0 0.0
    %1540 = vmatmul.mubr.f32.gmra.mrb[0].mxu0 %v1458
    %v1541 = vpop.f32.mrb[0].mxu0
    %v1542 = vadd.f32 0.0, %v1541
    %v1543 = vpop.f32.mrb[0].mxu0
    %v1544 = vadd.f32 0.0, %v1543
    %1545 = vmatprep.mubr.f32.mxu0 0.0
    %1546 = vmatmul.mubr.f32.gmra.mrb[0].mxu0 %v1461
    %v1547 = vpop.f32.mrb[0].mxu0
    %v1548 = vadd.f32 0.0, %v1547
    %v1549 = vpop.f32.mrb[0].mxu0
    %v1550 = vadd.f32 0.0, %v1549
    %1551 = vdwg.mxu0
    %1556 = vrot.lane.b32.xlu0 %v1447, 126
    %v1557 = vpop.permute.xlu0 %1556
    %1558 = vrot.lane.b32.xlu0 %v1448, 126
    %v1559 = vpop.permute.xlu0 %1558
    %1560 = vrot.lane.b32.xlu0 %v1449, 126
    %v1561 = vpop.permute.xlu0 %1560
    %1562 = vrot.lane.b32.xlu0 %v1450, 126
    %v1563 = vpop.permute.xlu0 %1562
    %v1564 = vsel %vm951, %v1557, 0
    %v1566 = vsel %vm951, %v1559, 0
    %v1568 = vsel %vm951, %v1561, 0
    %v1570 = vsel %vm951, %v1563, 0
    %1572 = vmatprep.subr.mxu0 %v969
    %1573 = vmatpush1.msra.mxu0 %v966
    %1574 = vmatprep.subr.mxu0 0.0
    %1575 = vmatpush1.msra.mxu0 0.0
    %1576 = vmatprep.subr.mxu0 0.0
    %1577 = vmatpush1.msra.mxu0 0.0
    %1578 = vmatprep.subr.mxu0 0.0
    %1579 = vmatpush1.msra.mxu0 0.0
    %1580 = vmatprep.subr.mxu0 0.0
    %1581 = vmatpush1.msra.mxu0 0.0
    %1582 = vmatprep.subr.mxu0 0.0
    %1583 = vmatpush1.msra.mxu0 0.0
    %1584 = vmatprep.subr.mxu0 0.0
    %1585 = vmatpush1.msra.mxu0 0.0
    %1586 = vmatprep.subr.mxu0 0.0
    %1587 = vmatpush1.msra.mxu0 0.0
    %1588 = vmatprep.subr.mxu0 0.0
    %1589 = vmatpush1.msra.mxu0 0.0
    %1590 = vmatprep.subr.mxu0 0.0
    %1591 = vmatpush1.msra.mxu0 0.0
    %1592 = vmatprep.subr.mxu0 0.0
    %1593 = vmatpush1.msra.mxu0 0.0
    %1594 = vmatprep.subr.mxu0 0.0
    %1595 = vmatpush1.msra.mxu0 0.0
    %1596 = vmatprep.subr.mxu0 0.0
    %1597 = vmatpush1.msra.mxu0 0.0
    %1598 = vmatprep.subr.mxu0 0.0
    %1599 = vmatpush1.msra.mxu0 0.0
    %1600 = vmatprep.subr.mxu0 0.0
    %1601 = vmatpush1.msra.mxu0 0.0
    %1602 = vmatprep.subr.mxu0 0.0
    %1603 = vmatpush1.msra.mxu0 0.0
    %1604 = vmatprep.subr.mxu0 0.0
    %1605 = vmatpush1.msra.mxu0 0.0
    %1606 = vmatprep.subr.mxu0 0.0
    %1607 = vmatpush1.msra.mxu0 0.0
    %1608 = vmatprep.subr.mxu0 0.0
    %1609 = vmatpush1.msra.mxu0 0.0
    %1610 = vmatprep.subr.mxu0 0.0
    %1611 = vmatpush1.msra.mxu0 0.0
    %1612 = vmatprep.subr.mxu0 0.0
    %1613 = vmatpush1.msra.mxu0 0.0
    %1614 = vmatprep.subr.mxu0 0.0
    %1615 = vmatpush1.msra.mxu0 0.0
    %1616 = vmatprep.subr.mxu0 0.0
    %1617 = vmatpush1.msra.mxu0 0.0
    %1618 = vmatprep.subr.mxu0 0.0
    %1619 = vmatpush1.msra.mxu0 0.0
    %1620 = vmatprep.subr.mxu0 0.0
    %1621 = vmatpush1.msra.mxu0 0.0
    %1622 = vmatprep.subr.mxu0 0.0
    %1623 = vmatpush1.msra.mxu0 0.0
    %1624 = vmatprep.subr.mxu0 0.0
    %1625 = vmatpush1.msra.mxu0 0.0
    %1626 = vmatprep.subr.mxu0 0.0
    %1627 = vmatpush1.msra.mxu0 0.0
    %1628 = vmatprep.subr.mxu0 0.0
    %1629 = vmatpush1.msra.mxu0 0.0
    %1630 = vmatprep.subr.mxu0 0.0
    %1631 = vmatpush1.msra.mxu0 0.0
    %1632 = vmatprep.subr.mxu0 0.0
    %1633 = vmatpush1.msra.mxu0 0.0
    %1634 = vmatprep.subr.mxu0 0.0
    %1635 = vmatpush1.msra.mxu0 0.0
    %1636 = vmatprep.mubr.f32.mxu0 0.0
    %1637 = vmatmul.mubr.f32.gmra.mrb[0].mxu0 %v1564
    %v1638 = vpop.f32.mrb[0].mxu0
    %v1639 = vadd.f32 0.0, %v1638
    %v1640 = vpop.f32.mrb[0].mxu0
    %v1641 = vadd.f32 0.0, %v1640
    %1642 = vmatprep.mubr.f32.mxu0 0.0
    %1643 = vmatmul.mubr.f32.gmra.mrb[0].mxu0 %v1566
    %v1644 = vpop.f32.mrb[0].mxu0
    %v1645 = vadd.f32 0.0, %v1644
    %v1646 = vpop.f32.mrb[0].mxu0
    %v1647 = vadd.f32 0.0, %v1646
    %1648 = vmatprep.mubr.f32.mxu0 0.0
    %1649 = vmatmul.mubr.f32.gmra.mrb[0].mxu0 %v1568
    %v1650 = vpop.f32.mrb[0].mxu0
    %v1651 = vadd.f32 0.0, %v1650
    %v1652 = vpop.f32.mrb[0].mxu0
    %v1653 = vadd.f32 0.0, %v1652
    %1654 = vmatprep.mubr.f32.mxu0 0.0
    %1655 = vmatmul.mubr.f32.gmra.mrb[0].mxu0 %v1570
    %v1656 = vpop.f32.mrb[0].mxu0
    %v1657 = vadd.f32 0.0, %v1656
    %v1658 = vpop.f32.mrb[0].mxu0
    %v1659 = vadd.f32 0.0, %v1658
    %1660 = vdwg.mxu0
    %v1661 = vsub.f32 %v1111, %v1530
    %v1662 = vsub.f32 %v1112, %v1532
    %v1663 = vsub.f32 %v1113, %v1536
    %v1664 = vsub.f32 %v1114, %v1538
    %v1665 = vsub.f32 %v1115, %v1542
    %v1666 = vsub.f32 %v1116, %v1544
    %v1667 = vsub.f32 %v1117, %v1548
    %v1668 = vsub.f32 %v1118, %v1550
    %v1669 = vmul.f32 %v1661, %v1639
    %v1670 = vmul.f32 %v1662, %v1641
    %v1671 = vmul.f32 %v1663, %v1645
    %v1672 = vmul.f32 %v1664, %v1647
    %v1673 = vmul.f32 %v1665, %v1651
    %v1674 = vmul.f32 %v1666, %v1653
    %v1675 = vmul.f32 %v1667, %v1657
    %v1676 = vmul.f32 %v1668, %v1659
    %1677 = vset.pattern.permute.xlu0 6
    %1678 = vperm.xlu0 %1677, %v40
    %v1679 = vpop.permute.xlu0 %1678
    %1681 = vset.pattern.permute.xlu0 6
    %1682 = vperm.xlu0 %1681, %v41
    %v1683 = vpop.permute.xlu0 %1682
    %1685 = vset.pattern.permute.xlu0 6
    %1686 = vperm.xlu0 %1685, %v42
    %v1687 = vpop.permute.xlu0 %1686
    %1689 = vset.pattern.permute.xlu0 6
    %1690 = vperm.xlu0 %1689, %v43
    %v1691 = vpop.permute.xlu0 %1690
    %v1693 = vmul.f32 %v1669, %v1679
    %v1694 = vmul.f32 %v1670, %v1679
    %v1695 = vmul.f32 %v1671, %v1683
    %v1696 = vmul.f32 %v1672, %v1683
    %v1697 = vmul.f32 %v1673, %v1687
    %v1698 = vmul.f32 %v1674, %v1687
    %v1699 = vmul.f32 %v1675, %v1691
    %v1700 = vmul.f32 %v1676, %v1691
    %1701 = vset.pattern.permute.xlu0 7
    %1702 = vperm.xlu0 %1701, %v40
    %v1703 = vpop.permute.xlu0 %1702
    %1705 = vset.pattern.permute.xlu0 7
    %1706 = vperm.xlu0 %1705, %v41
    %v1707 = vpop.permute.xlu0 %1706
    %1709 = vset.pattern.permute.xlu0 7
    %1710 = vperm.xlu0 %1709, %v42
    %v1711 = vpop.permute.xlu0 %1710
    %1713 = vset.pattern.permute.xlu0 7
    %1714 = vperm.xlu0 %1713, %v43
    %v1715 = vpop.permute.xlu0 %1714
    %v1717 = vadd.f32 %v1693, %v1703
    %v1718 = vadd.f32 %v1694, %v1703
    %v1719 = vadd.f32 %v1695, %v1707
    %v1720 = vadd.f32 %v1696, %v1707
    %v1721 = vadd.f32 %v1697, %v1711
    %v1722 = vadd.f32 %v1698, %v1711
    %v1723 = vadd.f32 %v1699, %v1715
    %v1724 = vadd.f32 %v1700, %v1715
    %v1725 = vld [vmem:[%s4] sm:$0xf]
    %v1726 = vld [vmem:[%s4 + $0x4] sm:$0xf]
    %v1727 = vld [vmem:[%s4 + $0x8] sm:$0xf]
    %v1728 = vld [vmem:[%s4 + $0xc] sm:$0xf]
    %v1729 = vld [vmem:[%s4 + $0x10] sm:$0xf]
    %v1730 = vld [vmem:[%s4 + $0x14] sm:$0xf]
    %v1731 = vld [vmem:[%s4 + $0x18] sm:$0xf]
    %v1732 = vld [vmem:[%s4 + $0x1c] sm:$0xf]
    %v1733 = vld [vmem:[%s4 + $0x20] sm:$0xf]
    %v1734 = vld [vmem:[%s4 + $0x24] sm:$0xf]
    %v1735 = vld [vmem:[%s4 + $0x28] sm:$0xf]
    %v1736 = vld [vmem:[%s4 + $0x2c] sm:$0xf]
    %v1737 = vld [vmem:[%s4 + $0x30] sm:$0xf]
    %v1738 = vld [vmem:[%s4 + $0x34] sm:$0xf]
    %v1739 = vld [vmem:[%s4 + $0x38] sm:$0xf]
    %v1740 = vld [vmem:[%s4 + $0x3c] sm:$0xf]
    %v1741 = vpack.c.bf16 %v1719, %v1717
    %v1742 = vpack.c.bf16 %v1720, %v1718
    %v1743 = vpack.c.bf16 %v1723, %v1721
    %v1744 = vpack.c.bf16 %v1724, %v1722
    %v1745 = vld [vmem:[%s5] sm:$0xff]
    %v1746 = vld [vmem:[%s5 + $0x8] sm:$0xff]
    %v1747 = vld [vmem:[%s5 + $0x10] sm:$0xff]
    %v1748 = vld [vmem:[%s5 + $0x18] sm:$0xff]
    %v1749 = vld [vmem:[%s5 + $0x20] sm:$0xff]
    %v1750 = vld [vmem:[%s5 + $0x28] sm:$0xff]
    %v1751 = vld [vmem:[%s5 + $0x30] sm:$0xff]
    %v1752 = vld [vmem:[%s5 + $0x38] sm:$0xff]
    %v1753 = vld [vmem:[%s5 + $0x40] sm:$0xff]
    %v1754 = vld [vmem:[%s5 + $0x48] sm:$0xff]
    %v1755 = vld [vmem:[%s5 + $0x50] sm:$0xff]
    %v1756 = vld [vmem:[%s5 + $0x58] sm:$0xff]
    %v1757 = vld [vmem:[%s5 + $0x60] sm:$0xff]
    %v1758 = vld [vmem:[%s5 + $0x68] sm:$0xff]
    %v1759 = vld [vmem:[%s5 + $0x70] sm:$0xff]
    %v1760 = vld [vmem:[%s5 + $0x78] sm:$0xff]
    %1762 = vset.pattern.permute.xlu0 0
    %1763 = vperm.xlu0 %1762, %v1745
    %v1764 = vpop.permute.xlu0 %1763
    %1767 = vset.pattern.permute.xlu0 0
    %1768 = vperm.xlu0 %1767, %v1746
    %v1769 = vpop.permute.xlu0 %1768
    %1772 = vset.pattern.permute.xlu0 0
    %1773 = vperm.xlu0 %1772, %v1747
    %v1774 = vpop.permute.xlu0 %1773
    %1777 = vset.pattern.permute.xlu0 0
    %1778 = vperm.xlu0 %1777, %v1748
    %v1779 = vpop.permute.xlu0 %1778
    %1782 = vset.pattern.permute.xlu0 0
    %1783 = vperm.xlu0 %1782, %v1749
    %v1784 = vpop.permute.xlu0 %1783
    %1787 = vset.pattern.permute.xlu0 0
    %1788 = vperm.xlu0 %1787, %v1750
    %v1789 = vpop.permute.xlu0 %1788
    %1792 = vset.pattern.permute.xlu0 0
    %1793 = vperm.xlu0 %1792, %v1751
    %v1794 = vpop.permute.xlu0 %1793
    %1797 = vset.pattern.permute.xlu0 0
    %1798 = vperm.xlu0 %1797, %v1752
    %v1799 = vpop.permute.xlu0 %1798
    %1802 = vset.pattern.permute.xlu0 0
    %1803 = vperm.xlu0 %1802, %v1753
    %v1804 = vpop.permute.xlu0 %1803
    %1807 = vset.pattern.permute.xlu0 0
    %1808 = vperm.xlu0 %1807, %v1754
    %v1809 = vpop.permute.xlu0 %1808
    %1812 = vset.pattern.permute.xlu0 0
    %1813 = vperm.xlu0 %1812, %v1755
    %v1814 = vpop.permute.xlu0 %1813
    %1817 = vset.pattern.permute.xlu0 0
    %1818 = vperm.xlu0 %1817, %v1756
    %v1819 = vpop.permute.xlu0 %1818
    %1822 = vset.pattern.permute.xlu0 0
    %1823 = vperm.xlu0 %1822, %v1757
    %v1824 = vpop.permute.xlu0 %1823
    %1827 = vset.pattern.permute.xlu0 0
    %1828 = vperm.xlu0 %1827, %v1758
    %v1829 = vpop.permute.xlu0 %1828
    %1832 = vset.pattern.permute.xlu0 0
    %1833 = vperm.xlu0 %1832, %v1759
    %v1834 = vpop.permute.xlu0 %1833
    %1837 = vset.pattern.permute.xlu0 0
    %1838 = vperm.xlu0 %1837, %v1760
    %v1839 = vpop.permute.xlu0 %1838
    %v1857 = vunpack.c.l.b16 %v1725
    %v1858 = vunpack.c.l.b16 %v1726
    %v1859 = vunpack.c.l.b16 %v1727
    %v1860 = vunpack.c.l.b16 %v1728
    %v1861 = vunpack.c.l.b16 %v1729
    %v1862 = vunpack.c.l.b16 %v1730
    %v1863 = vunpack.c.l.b16 %v1731
    %v1864 = vunpack.c.l.b16 %v1732
    %v1865 = vunpack.c.l.b16 %v1733
    %v1866 = vunpack.c.l.b16 %v1734
    %v1867 = vunpack.c.l.b16 %v1735
    %v1868 = vunpack.c.l.b16 %v1736
    %v1869 = vunpack.c.l.b16 %v1737
    %v1870 = vunpack.c.l.b16 %v1738
    %v1871 = vunpack.c.l.b16 %v1739
    %v1872 = vunpack.c.l.b16 %v1740
    %v1873 = vpack.c.b16 %v1858, %v1857
    %v1874 = vpack.c.b16 %v1860, %v1859
    %v1875 = vpack.c.b16 %v1862, %v1861
    %v1876 = vpack.c.b16 %v1864, %v1863
    %v1877 = vpack.c.b16 %v1866, %v1865
    %v1878 = vpack.c.b16 %v1868, %v1867
    %v1879 = vpack.c.b16 %v1870, %v1869
    %v1880 = vpack.c.b16 %v1872, %v1871
    %v1882 = vsel %vm1321, %v1873, 0
    %v1885 = vsel %vm1321, %v1874, 0
    %v1888 = vsel %vm1321, %v1875, 0
    %v1891 = vsel %vm1321, %v1876, 0
    %v1894 = vsel %vm1321, %v1877, 0
    %v1897 = vsel %vm1321, %v1878, 0
    %v1900 = vsel %vm1321, %v1879, 0
    %v1903 = vsel %vm1321, %v1880, 0
    %1905 = vmatprep.subr.bf16.mxu0 %v1742
    %1906 = vmatpush1.bf16.msra.mxu0 %v1741
    %1907 = vmatprep.subr.bf16.mxu0 %v1744
    %1908 = vmatpush1.bf16.msra.mxu0 %v1743
    %1909 = vmatprep.subr.bf16.mxu0 0
    %1910 = vmatpush1.bf16.msra.mxu0 0
    %1911 = vmatprep.subr.bf16.mxu0 0
    %1912 = vmatpush1.bf16.msra.mxu0 0
    %1913 = vmatprep.subr.bf16.mxu0 0
    %1914 = vmatpush1.bf16.msra.mxu0 0
    %1915 = vmatprep.subr.bf16.mxu0 0
    %1916 = vmatpush1.bf16.msra.mxu0 0
    %1917 = vmatprep.subr.bf16.mxu0 0
    %1918 = vmatpush1.bf16.msra.mxu0 0
    %1919 = vmatprep.subr.bf16.mxu0 0
    %1920 = vmatpush1.bf16.msra.mxu0 0
    %1921 = vmatprep.subr.bf16.mxu0 0
    %1922 = vmatpush1.bf16.msra.mxu0 0
    %1923 = vmatprep.subr.bf16.mxu0 0
    %1924 = vmatpush1.bf16.msra.mxu0 0
    %1925 = vmatprep.subr.bf16.mxu0 0
    %1926 = vmatpush1.bf16.msra.mxu0 0
    %1927 = vmatprep.subr.bf16.mxu0 0
    %1928 = vmatpush1.bf16.msra.mxu0 0
    %1929 = vmatprep.subr.bf16.mxu0 0
    %1930 = vmatpush1.bf16.msra.mxu0 0
    %1931 = vmatprep.subr.bf16.mxu0 0
    %1932 = vmatpush1.bf16.msra.mxu0 0
    %1933 = vmatprep.subr.bf16.mxu0 0
    %1934 = vmatpush1.bf16.msra.mxu0 0
    %1935 = vmatprep.subr.bf16.mxu0 0
    %1936 = vmatpush1.bf16.msra.mxu0 0
    %1937 = vmatprep.mubr.bf16.mxu0 0
    %1938 = vmatmul.mubr.bf16.gmra.mrb[0].mxu0 %v1882
    %v1939 = vpop.f32.mrb[0].mxu0
    %v1940 = vadd.f32 %v1764, %v1939
    %v1941 = vpop.f32.mrb[0].mxu0
    %v1942 = vadd.f32 %v1764, %v1941
    %v1943 = vpop.f32.mrb[0].mxu0
    %v1944 = vadd.f32 %v1769, %v1943
    %v1945 = vpop.f32.mrb[0].mxu0
    %v1946 = vadd.f32 %v1769, %v1945
    %1947 = vmatprep.mubr.bf16.mxu0 0
    %1948 = vmatmul.mubr.bf16.gmra.mrb[0].mxu0 %v1885
    %v1949 = vpop.f32.mrb[0].mxu0
    %v1950 = vadd.f32 %v1774, %v1949
    %v1951 = vpop.f32.mrb[0].mxu0
    %v1952 = vadd.f32 %v1774, %v1951
    %v1953 = vpop.f32.mrb[0].mxu0
    %v1954 = vadd.f32 %v1779, %v1953
    %v1955 = vpop.f32.mrb[0].mxu0
    %v1956 = vadd.f32 %v1779, %v1955
    %1957 = vmatprep.mubr.bf16.mxu0 0
    %1958 = vmatmul.mubr.bf16.gmra.mrb[0].mxu0 %v1888
    %v1959 = vpop.f32.mrb[0].mxu0
    %v1960 = vadd.f32 %v1784, %v1959
    %v1961 = vpop.f32.mrb[0].mxu0
    %v1962 = vadd.f32 %v1784, %v1961
    %v1963 = vpop.f32.mrb[0].mxu0
    %v1964 = vadd.f32 %v1789, %v1963
    %v1965 = vpop.f32.mrb[0].mxu0
    %v1966 = vadd.f32 %v1789, %v1965
    %1967 = vmatprep.mubr.bf16.mxu0 0
    %1968 = vmatmul.mubr.bf16.gmra.mrb[0].mxu0 %v1891
    %v1969 = vpop.f32.mrb[0].mxu0
    %v1970 = vadd.f32 %v1794, %v1969
    %v1971 = vpop.f32.mrb[0].mxu0
    %v1972 = vadd.f32 %v1794, %v1971
    %v1973 = vpop.f32.mrb[0].mxu0
    %v1974 = vadd.f32 %v1799, %v1973
    %v1975 = vpop.f32.mrb[0].mxu0
    %v1976 = vadd.f32 %v1799, %v1975
    %1977 = vmatprep.mubr.bf16.mxu0 0
    %1978 = vmatmul.mubr.bf16.gmra.mrb[0].mxu0 %v1894
    %v1979 = vpop.f32.mrb[0].mxu0
    %v1980 = vadd.f32 %v1804, %v1979
    %v1981 = vpop.f32.mrb[0].mxu0
    %v1982 = vadd.f32 %v1804, %v1981
    %v1983 = vpop.f32.mrb[0].mxu0
    %v1984 = vadd.f32 %v1809, %v1983
    %v1985 = vpop.f32.mrb[0].mxu0
    %v1986 = vadd.f32 %v1809, %v1985
    %1987 = vmatprep.mubr.bf16.mxu0 0
    %1988 = vmatmul.mubr.bf16.gmra.mrb[0].mxu0 %v1897
    %v1989 = vpop.f32.mrb[0].mxu0
    %v1990 = vadd.f32 %v1814, %v1989
    %v1991 = vpop.f32.mrb[0].mxu0
    %v1992 = vadd.f32 %v1814, %v1991
    %v1993 = vpop.f32.mrb[0].mxu0
    %v1994 = vadd.f32 %v1819, %v1993
    %v1995 = vpop.f32.mrb[0].mxu0
    %v1996 = vadd.f32 %v1819, %v1995
    %1997 = vmatprep.mubr.bf16.mxu0 0
    %1998 = vmatmul.mubr.bf16.gmra.mrb[0].mxu0 %v1900
    %v1999 = vpop.f32.mrb[0].mxu0
    %v2000 = vadd.f32 %v1824, %v1999
    %v2001 = vpop.f32.mrb[0].mxu0
    %v2002 = vadd.f32 %v1824, %v2001
    %v2003 = vpop.f32.mrb[0].mxu0
    %v2004 = vadd.f32 %v1829, %v2003
    %v2005 = vpop.f32.mrb[0].mxu0
    %v2006 = vadd.f32 %v1829, %v2005
    %2007 = vmatprep.mubr.bf16.mxu0 0
    %2008 = vmatmul.mubr.bf16.gmra.mrb[0].mxu0 %v1903
    %v2009 = vpop.f32.mrb[0].mxu0
    %v2010 = vadd.f32 %v1834, %v2009
    %v2011 = vpop.f32.mrb[0].mxu0
    %v2012 = vadd.f32 %v1834, %v2011
    %v2013 = vpop.f32.mrb[0].mxu0
    %v2014 = vadd.f32 %v1839, %v2013
    %v2015 = vpop.f32.mrb[0].mxu0
    %v2016 = vadd.f32 %v1839, %v2015
    %2017 = vdwg.mxu0
    %v2018 = vmul.f32 %v1940, 0.5
    %v2019 = vmul.f32 %v1942, 0.5
    %v2020 = vmul.f32 %v1944, 0.5
    %v2021 = vmul.f32 %v1946, 0.5
    %v2022 = vmul.f32 %v1950, 0.5
    %v2023 = vmul.f32 %v1952, 0.5
    %v2024 = vmul.f32 %v1954, 0.5
    %v2025 = vmul.f32 %v1956, 0.5
    %v2026 = vmul.f32 %v1960, 0.5
    %v2027 = vmul.f32 %v1962, 0.5
    %v2028 = vmul.f32 %v1964, 0.5
    %v2029 = vmul.f32 %v1966, 0.5
    %v2030 = vmul.f32 %v1970, 0.5
    %v2031 = vmul.f32 %v1972, 0.5
    %v2032 = vmul.f32 %v1974, 0.5
    %v2033 = vmul.f32 %v1976, 0.5
    %v2034 = vmul.f32 %v1980, 0.5
    %v2035 = vmul.f32 %v1982, 0.5
    %v2036 = vmul.f32 %v1984, 0.5
    %v2037 = vmul.f32 %v1986, 0.5
    %v2038 = vmul.f32 %v1990, 0.5
    %v2039 = vmul.f32 %v1992, 0.5
    %v2040 = vmul.f32 %v1994, 0.5
    %v2041 = vmul.f32 %v1996, 0.5
    %v2042 = vmul.f32 %v2000, 0.5
    %v2043 = vmul.f32 %v2002, 0.5
    %v2044 = vmul.f32 %v2004, 0.5
    %v2045 = vmul.f32 %v2006, 0.5
    %v2046 = vmul.f32 %v2010, 0.5
    %v2047 = vmul.f32 %v2012, 0.5
    %v2048 = vmul.f32 %v2014, 0.5
    %v2049 = vmul.f32 %v2016, 0.5
    %v2050 = vmul.f32 %v1940, 0.044715
    %v2051 = vmul.f32 %v1942, 0.044715
    %v2052 = vmul.f32 %v1944, 0.044715
    %v2053 = vmul.f32 %v1946, 0.044715
    %v2054 = vmul.f32 %v1950, 0.044715
    %v2055 = vmul.f32 %v1952, 0.044715
    %v2056 = vmul.f32 %v1954, 0.044715
    %v2057 = vmul.f32 %v1956, 0.044715
    %v2058 = vmul.f32 %v1960, 0.044715
    %v2059 = vmul.f32 %v1962, 0.044715
    %v2060 = vmul.f32 %v1964, 0.044715
    %v2061 = vmul.f32 %v1966, 0.044715
    %v2062 = vmul.f32 %v1970, 0.044715
    %v2063 = vmul.f32 %v1972, 0.044715
    %v2064 = vmul.f32 %v1974, 0.044715
    %v2065 = vmul.f32 %v1976, 0.044715
    %v2066 = vmul.f32 %v1980, 0.044715
    %v2067 = vmul.f32 %v1982, 0.044715
    %v2068 = vmul.f32 %v1984, 0.044715
    %v2069 = vmul.f32 %v1986, 0.044715
    %v2070 = vmul.f32 %v1990, 0.044715
    %v2071 = vmul.f32 %v1992, 0.044715
    %v2072 = vmul.f32 %v1994, 0.044715
    %v2073 = vmul.f32 %v1996, 0.044715
    %v2074 = vmul.f32 %v2000, 0.044715
    %v2075 = vmul.f32 %v2002, 0.044715
    %v2076 = vmul.f32 %v2004, 0.044715
    %v2077 = vmul.f32 %v2006, 0.044715
    %v2078 = vmul.f32 %v2010, 0.044715
    %v2079 = vmul.f32 %v2012, 0.044715
    %v2080 = vmul.f32 %v2014, 0.044715
    %v2081 = vmul.f32 %v2016, 0.044715
    %v2082 = vmul.f32 %v2050, %v1940
    %v2083 = vmul.f32 %v2051, %v1942
    %v2084 = vmul.f32 %v2052, %v1944
    %v2085 = vmul.f32 %v2053, %v1946
    %v2086 = vmul.f32 %v2054, %v1950
    %v2087 = vmul.f32 %v2055, %v1952
    %v2088 = vmul.f32 %v2056, %v1954
    %v2089 = vmul.f32 %v2057, %v1956
    %v2090 = vmul.f32 %v2058, %v1960
    %v2091 = vmul.f32 %v2059, %v1962
    %v2092 = vmul.f32 %v2060, %v1964
    %v2093 = vmul.f32 %v2061, %v1966
    %v2094 = vmul.f32 %v2062, %v1970
    %v2095 = vmul.f32 %v2063, %v1972
    %v2096 = vmul.f32 %v2064, %v1974
    %v2097 = vmul.f32 %v2065, %v1976
    %v2098 = vmul.f32 %v2066, %v1980
    %v2099 = vmul.f32 %v2067, %v1982
    %v2100 = vmul.f32 %v2068, %v1984
    %v2101 = vmul.f32 %v2069, %v1986
    %v2102 = vmul.f32 %v2070, %v1990
    %v2103 = vmul.f32 %v2071, %v1992
    %v2104 = vmul.f32 %v2072, %v1994
    %v2105 = vmul.f32 %v2073, %v1996
    %v2106 = vmul.f32 %v2074, %v2000
    %v2107 = vmul.f32 %v2075, %v2002
    %v2108 = vmul.f32 %v2076, %v2004
    %v2109 = vmul.f32 %v2077, %v2006
    %v2110 = vmul.f32 %v2078, %v2010
    %v2111 = vmul.f32 %v2079, %v2012
    %v2112 = vmul.f32 %v2080, %v2014
    %v2113 = vmul.f32 %v2081, %v2016
    %v2114 = vmul.f32 %v2082, %v1940
    %v2115 = vmul.f32 %v2083, %v1942
    %v2116 = vmul.f32 %v2084, %v1944
    %v2117 = vmul.f32 %v2085, %v1946
    %v2118 = vmul.f32 %v2086, %v1950
    %v2119 = vmul.f32 %v2087, %v1952
    %v2120 = vmul.f32 %v2088, %v1954
    %v2121 = vmul.f32 %v2089, %v1956
    %v2122 = vmul.f32 %v2090, %v1960
    %v2123 = vmul.f32 %v2091, %v1962
    %v2124 = vmul.f32 %v2092, %v1964
    %v2125 = vmul.f32 %v2093, %v1966
    %v2126 = vmul.f32 %v2094, %v1970
    %v2127 = vmul.f32 %v2095, %v1972
    %v2128 = vmul.f32 %v2096, %v1974
    %v2129 = vmul.f32 %v2097, %v1976
    %v2130 = vmul.f32 %v2098, %v1980
    %v2131 = vmul.f32 %v2099, %v1982
    %v2132 = vmul.f32 %v2100, %v1984
    %v2133 = vmul.f32 %v2101, %v1986
    %v2134 = vmul.f32 %v2102, %v1990
    %v2135 = vmul.f32 %v2103, %v1992
    %v2136 = vmul.f32 %v2104, %v1994
    %v2137 = vmul.f32 %v2105, %v1996
    %v2138 = vmul.f32 %v2106, %v2000
    %v2139 = vmul.f32 %v2107, %v2002
    %v2140 = vmul.f32 %v2108, %v2004
    %v2141 = vmul.f32 %v2109, %v2006
    %v2142 = vmul.f32 %v2110, %v2010
    %v2143 = vmul.f32 %v2111, %v2012
    %v2144 = vmul.f32 %v2112, %v2014
    %v2145 = vmul.f32 %v2113, %v2016
    %v2146 = vadd.f32 %v1940, %v2114
    %v2147 = vadd.f32 %v1942, %v2115
    %v2148 = vadd.f32 %v1944, %v2116
    %v2149 = vadd.f32 %v1946, %v2117
    %v2150 = vadd.f32 %v1950, %v2118
    %v2151 = vadd.f32 %v1952, %v2119
    %v2152 = vadd.f32 %v1954, %v2120
    %v2153 = vadd.f32 %v1956, %v2121
    %v2154 = vadd.f32 %v1960, %v2122
    %v2155 = vadd.f32 %v1962, %v2123
    %v2156 = vadd.f32 %v1964, %v2124
    %v2157 = vadd.f32 %v1966, %v2125
    %v2158 = vadd.f32 %v1970, %v2126
    %v2159 = vadd.f32 %v1972, %v2127
    %v2160 = vadd.f32 %v1974, %v2128
    %v2161 = vadd.f32 %v1976, %v2129
    %v2162 = vadd.f32 %v1980, %v2130
    %v2163 = vadd.f32 %v1982, %v2131
    %v2164 = vadd.f32 %v1984, %v2132
    %v2165 = vadd.f32 %v1986, %v2133
    %v2166 = vadd.f32 %v1990, %v2134
    %v2167 = vadd.f32 %v1992, %v2135
    %v2168 = vadd.f32 %v1994, %v2136
    %v2169 = vadd.f32 %v1996, %v2137
    %v2170 = vadd.f32 %v2000, %v2138
    %v2171 = vadd.f32 %v2002, %v2139
    %v2172 = vadd.f32 %v2004, %v2140
    %v2173 = vadd.f32 %v2006, %v2141
    %v2174 = vadd.f32 %v2010, %v2142
    %v2175 = vadd.f32 %v2012, %v2143
    %v2176 = vadd.f32 %v2014, %v2144
    %v2177 = vadd.f32 %v2016, %v2145
    %v2178 = vmul.f32 %v2146, 0.7978846
    %v2179 = vmul.f32 %v2147, 0.7978846
    %v2180 = vmul.f32 %v2148, 0.7978846
    %v2181 = vmul.f32 %v2149, 0.7978846
    %v2182 = vmul.f32 %v2150, 0.7978846
    %v2183 = vmul.f32 %v2151, 0.7978846
    %v2184 = vmul.f32 %v2152, 0.7978846
    %v2185 = vmul.f32 %v2153, 0.7978846
    %v2186 = vmul.f32 %v2154, 0.7978846
    %v2187 = vmul.f32 %v2155, 0.7978846
    %v2188 = vmul.f32 %v2156, 0.7978846
    %v2189 = vmul.f32 %v2157, 0.7978846
    %v2190 = vmul.f32 %v2158, 0.7978846
    %v2191 = vmul.f32 %v2159, 0.7978846
    %v2192 = vmul.f32 %v2160, 0.7978846
    %v2193 = vmul.f32 %v2161, 0.7978846
    %v2194 = vmul.f32 %v2162, 0.7978846
    %v2195 = vmul.f32 %v2163, 0.7978846
    %v2196 = vmul.f32 %v2164, 0.7978846
    %v2197 = vmul.f32 %v2165, 0.7978846
    %v2198 = vmul.f32 %v2166, 0.7978846
    %v2199 = vmul.f32 %v2167, 0.7978846
    %v2200 = vmul.f32 %v2168, 0.7978846
    %v2201 = vmul.f32 %v2169, 0.7978846
    %v2202 = vmul.f32 %v2170, 0.7978846
    %v2203 = vmul.f32 %v2171, 0.7978846
    %v2204 = vmul.f32 %v2172, 0.7978846
    %v2205 = vmul.f32 %v2173, 0.7978846
    %v2206 = vmul.f32 %v2174, 0.7978846
    %v2207 = vmul.f32 %v2175, 0.7978846
    %v2208 = vmul.f32 %v2176, 0.7978846
    %v2209 = vmul.f32 %v2177, 0.7978846
    %v2210 = vtanh.pop %v2178
    %v2211 = vtanh.pop %v2179
    %v2212 = vtanh.pop %v2180
    %v2213 = vtanh.pop %v2181
    %v2214 = vtanh.pop %v2182
    %v2215 = vtanh.pop %v2183
    %v2216 = vtanh.pop %v2184
    %v2217 = vtanh.pop %v2185
    %v2218 = vtanh.pop %v2186
    %v2219 = vtanh.pop %v2187
    %v2220 = vtanh.pop %v2188
    %v2221 = vtanh.pop %v2189
    %v2222 = vtanh.pop %v2190
    %v2223 = vtanh.pop %v2191
    %v2224 = vtanh.pop %v2192
    %v2225 = vtanh.pop %v2193
    %v2226 = vtanh.pop %v2194
    %v2227 = vtanh.pop %v2195
    %v2228 = vtanh.pop %v2196
    %v2229 = vtanh.pop %v2197
    %v2230 = vtanh.pop %v2198
    %v2231 = vtanh.pop %v2199
    %v2232 = vtanh.pop %v2200
    %v2233 = vtanh.pop %v2201
    %v2234 = vtanh.pop %v2202
    %v2235 = vtanh.pop %v2203
    %v2236 = vtanh.pop %v2204
    %v2237 = vtanh.pop %v2205
    %v2238 = vtanh.pop %v2206
    %v2239 = vtanh.pop %v2207
    %v2240 = vtanh.pop %v2208
    %v2241 = vtanh.pop %v2209
    %v2242 = vadd.f32 %v2210, 1.0
    %v2243 = vadd.f32 %v2211, 1.0
    %v2244 = vadd.f32 %v2212, 1.0
    %v2245 = vadd.f32 %v2213, 1.0
    %v2246 = vadd.f32 %v2214, 1.0
    %v2247 = vadd.f32 %v2215, 1.0
    %v2248 = vadd.f32 %v2216, 1.0
    %v2249 = vadd.f32 %v2217, 1.0
    %v2250 = vadd.f32 %v2218, 1.0
    %v2251 = vadd.f32 %v2219, 1.0
    %v2252 = vadd.f32 %v2220, 1.0
    %v2253 = vadd.f32 %v2221, 1.0
    %v2254 = vadd.f32 %v2222, 1.0
    %v2255 = vadd.f32 %v2223, 1.0
    %v2256 = vadd.f32 %v2224, 1.0
    %v2257 = vadd.f32 %v2225, 1.0
    %v2258 = vadd.f32 %v2226, 1.0
    %v2259 = vadd.f32 %v2227, 1.0
    %v2260 = vadd.f32 %v2228, 1.0
    %v2261 = vadd.f32 %v2229, 1.0
    %v2262 = vadd.f32 %v2230, 1.0
    %v2263 = vadd.f32 %v2231, 1.0
    %v2264 = vadd.f32 %v2232, 1.0
    %v2265 = vadd.f32 %v2233, 1.0
    %v2266 = vadd.f32 %v2234, 1.0
    %v2267 = vadd.f32 %v2235, 1.0
    %v2268 = vadd.f32 %v2236, 1.0
    %v2269 = vadd.f32 %v2237, 1.0
    %v2270 = vadd.f32 %v2238, 1.0
    %v2271 = vadd.f32 %v2239, 1.0
    %v2272 = vadd.f32 %v2240, 1.0
    %v2273 = vadd.f32 %v2241, 1.0
    %v2274 = vmul.f32 %v2018, %v2242
    %v2275 = vmul.f32 %v2019, %v2243
    %v2276 = vmul.f32 %v2020, %v2244
    %v2277 = vmul.f32 %v2021, %v2245
    %v2278 = vmul.f32 %v2022, %v2246
    %v2279 = vmul.f32 %v2023, %v2247
    %v2280 = vmul.f32 %v2024, %v2248
    %v2281 = vmul.f32 %v2025, %v2249
    %v2282 = vmul.f32 %v2026, %v2250
    %v2283 = vmul.f32 %v2027, %v2251
    %v2284 = vmul.f32 %v2028, %v2252
    %v2285 = vmul.f32 %v2029, %v2253
    %v2286 = vmul.f32 %v2030, %v2254
    %v2287 = vmul.f32 %v2031, %v2255
    %v2288 = vmul.f32 %v2032, %v2256
    %v2289 = vmul.f32 %v2033, %v2257
    %v2290 = vmul.f32 %v2034, %v2258
    %v2291 = vmul.f32 %v2035, %v2259
    %v2292 = vmul.f32 %v2036, %v2260
    %v2293 = vmul.f32 %v2037, %v2261
    %v2294 = vmul.f32 %v2038, %v2262
    %v2295 = vmul.f32 %v2039, %v2263
    %v2296 = vmul.f32 %v2040, %v2264
    %v2297 = vmul.f32 %v2041, %v2265
    %v2298 = vmul.f32 %v2042, %v2266
    %v2299 = vmul.f32 %v2043, %v2267
    %v2300 = vmul.f32 %v2044, %v2268
    %v2301 = vmul.f32 %v2045, %v2269
    %v2302 = vmul.f32 %v2046, %v2270
    %v2303 = vmul.f32 %v2047, %v2271
    %v2304 = vmul.f32 %v2048, %v2272
    %v2305 = vmul.f32 %v2049, %v2273
    %v2306 = vld [vmem:[%s6] sm:$0xf]
    %v2307 = vld [vmem:[%s6 + $0x4] sm:$0xf]
    %v2308 = vld [vmem:[%s6 + $0x8] sm:$0xf]
    %v2309 = vld [vmem:[%s6 + $0xc] sm:$0xf]
    %v2310 = vpack.c.bf16 %v2276, %v2274
    %v2311 = vpack.c.bf16 %v2277, %v2275
    %v2312 = vpack.c.bf16 %v2280, %v2278
    %v2313 = vpack.c.bf16 %v2281, %v2279
    %v2314 = vpack.c.bf16 %v2284, %v2282
    %v2315 = vpack.c.bf16 %v2285, %v2283
    %v2316 = vpack.c.bf16 %v2288, %v2286
    %v2317 = vpack.c.bf16 %v2289, %v2287
    %v2318 = vpack.c.bf16 %v2292, %v2290
    %v2319 = vpack.c.bf16 %v2293, %v2291
    %v2320 = vpack.c.bf16 %v2296, %v2294
    %v2321 = vpack.c.bf16 %v2297, %v2295
    %v2322 = vpack.c.bf16 %v2300, %v2298
    %v2323 = vpack.c.bf16 %v2301, %v2299
    %v2324 = vpack.c.bf16 %v2304, %v2302
    %v2325 = vpack.c.bf16 %v2305, %v2303
    %v2326 = vld [vmem:[%s7] sm:$0xff]
    %v2327 = vld [vmem:[%s7 + $0x8] sm:$0xff]
    %v2328 = vld [vmem:[%s7 + $0x10] sm:$0xff]
    %v2329 = vld [vmem:[%s7 + $0x18] sm:$0xff]
    %2331 = vset.pattern.permute.xlu0 0
    %2332 = vperm.xlu0 %2331, %v2326
    %v2333 = vpop.permute.xlu0 %2332
    %2336 = vset.pattern.permute.xlu0 0
    %2337 = vperm.xlu0 %2336, %v2327
    %v2338 = vpop.permute.xlu0 %2337
    %2341 = vset.pattern.permute.xlu0 0
    %2342 = vperm.xlu0 %2341, %v2328
    %v2343 = vpop.permute.xlu0 %2342
    %2346 = vset.pattern.permute.xlu0 0
    %2347 = vperm.xlu0 %2346, %v2329
    %v2348 = vpop.permute.xlu0 %2347
    %v2354 = vunpack.c.l.b16 %v2306
    %v2355 = vunpack.c.l.b16 %v2307
    %v2356 = vunpack.c.l.b16 %v2308
    %v2357 = vunpack.c.l.b16 %v2309
    %v2358 = vpack.c.b16 %v2355, %v2354
    %v2359 = vpack.c.b16 %v2357, %v2356
    %2362 = vmatprep.subr.bf16.mxu0 %v2311
    %2363 = vmatpush1.bf16.msra.mxu0 %v2310
    %2364 = vmatprep.subr.bf16.mxu0 %v2313
    %2365 = vmatpush1.bf16.msra.mxu0 %v2312
    %2366 = vmatprep.subr.bf16.mxu0 %v2315
    %2367 = vmatpush1.bf16.msra.mxu0 %v2314
    %2368 = vmatprep.subr.bf16.mxu0 %v2317
    %2369 = vmatpush1.bf16.msra.mxu0 %v2316
    %2370 = vmatprep.subr.bf16.mxu0 %v2319
    %2371 = vmatpush1.bf16.msra.mxu0 %v2318
    %2372 = vmatprep.subr.bf16.mxu0 %v2321
    %2373 = vmatpush1.bf16.msra.mxu0 %v2320
    %2374 = vmatprep.subr.bf16.mxu0 %v2323
    %2375 = vmatpush1.bf16.msra.mxu0 %v2322
    %2376 = vmatprep.subr.bf16.mxu0 %v2325
    %2377 = vmatpush1.bf16.msra.mxu0 %v2324
    %2378 = vmatprep.subr.bf16.mxu0 0
    %2379 = vmatpush1.bf16.msra.mxu0 0
    %2380 = vmatprep.subr.bf16.mxu0 0
    %2381 = vmatpush1.bf16.msra.mxu0 0
    %2382 = vmatprep.subr.bf16.mxu0 0
    %2383 = vmatpush1.bf16.msra.mxu0 0
    %2384 = vmatprep.subr.bf16.mxu0 0
    %2385 = vmatpush1.bf16.msra.mxu0 0
    %2386 = vmatprep.subr.bf16.mxu0 0
    %2387 = vmatpush1.bf16.msra.mxu0 0
    %2388 = vmatprep.subr.bf16.mxu0 0
    %2389 = vmatpush1.bf16.msra.mxu0 0
    %2390 = vmatprep.subr.bf16.mxu0 0
    %2391 = vmatpush1.bf16.msra.mxu0 0
    %2392 = vmatprep.subr.bf16.mxu0 0
    %2393 = vmatpush1.bf16.msra.mxu0 0
    %2394 = vmatprep.mubr.bf16.mxu0 0
    %2395 = vmatmul.mubr.bf16.gmra.mrb[0].mxu0 %v2358
    %v2396 = vpop.f32.mrb[0].mxu0
    %v2397 = vadd.f32 %v2333, %v2396
    %v2398 = vpop.f32.mrb[0].mxu0
    %v2399 = vadd.f32 %v2333, %v2398
    %v2400 = vpop.f32.mrb[0].mxu0
    %v2401 = vadd.f32 %v2338, %v2400
    %v2402 = vpop.f32.mrb[0].mxu0
    %v2403 = vadd.f32 %v2338, %v2402
    %2404 = vmatprep.mubr.bf16.mxu0 0
    %2405 = vmatmul.mubr.bf16.gmra.mrb[0].mxu0 %v2359
    %v2406 = vpop.f32.mrb[0].mxu0
    %v2407 = vadd.f32 %v2343, %v2406
    %v2408 = vpop.f32.mrb[0].mxu0
    %v2409 = vadd.f32 %v2343, %v2408
    %v2410 = vpop.f32.mrb[0].mxu0
    %v2411 = vadd.f32 %v2348, %v2410
    %v2412 = vpop.f32.mrb[0].mxu0
    %v2413 = vadd.f32 %v2348, %v2412
    %2414 = vdwg.mxu0
    %v2415 = vadd.f32 %v1111, %v2397
    %v2416 = vadd.f32 %v1112, %v2399
    %v2417 = vadd.f32 %v1113, %v2401
    %v2418 = vadd.f32 %v1114, %v2403
    %v2419 = vadd.f32 %v1115, %v2407
    %v2420 = vadd.f32 %v1116, %v2409
    %v2421 = vadd.f32 %v1117, %v2411
    %v2422 = vadd.f32 %v1118, %v2413
    %2423 = vst [vmem:[#allocation2] sm:$0xff] %v2415
    %2424 = vst [vmem:[#allocation2 + $0x8] sm:$0xff] %v2416
    %2425 = vst [vmem:[#allocation2 + $0x10] sm:$0xff] %v2417
    %2426 = vst [vmem:[#allocation2 + $0x18] sm:$0xff] %v2418
    %2427 = vst [vmem:[#allocation2 + $0x20] sm:$0xff] %v2419
    %2428 = vst [vmem:[#allocation2 + $0x28] sm:$0xff] %v2420
    %2429 = vst [vmem:[#allocation2 + $0x30] sm:$0xff] %v2421
    %2430 = vst [vmem:[#allocation2 + $0x38] sm:$0xff] %v2422
    // Predicated region
    $region34: #{tpu_custom_call.1} parent=1 // pred_check
      _
    $region35: #{tpu_custom_call.1} parent=1 // pred_check_branch
      %2432 = sbr.rel (0) target = $region37
    $region36: #{tpu_custom_call.1} parent=1 // pred_region
      %s2434 = ssub.s32 1024, 1024
      %2435 = vsyncadd [#allocation3], %s2434
      %s2436 = sshll.u32 [#allocation2], 4
      %s2437 = int_to_ptr.vmem [resolvable:$true] %s2436
      %2442 = dma.vmem_to_hbm [thread:$0]  %s2437, 1024, %s8, [#allocation3], 256, 256, 16
    $region37: #{tpu_custom_call.1} parent=1 // pred_fallthru
      _
    // Predicated region
    $region38: #{tpu_custom_call.1} parent=1 // pred_check
      _
    $region39: #{tpu_custom_call.1} parent=1 // pred_check_branch
      %2444 = sbr.rel (0) target = $region41
    $region40: #{tpu_custom_call.1} parent=1 // pred_region
      %2445 = dma.done [#allocation3], 1024
    $region41: #{tpu_custom_call.1} parent=1 // pred_fallthru
      _
    %2446 = vsyncpa [#allocation3], 1

</llo_original>
